<compile_context>
chip_gen: v6e
topology: v6e:2x2x1
jax: 0.10.0
libtpu: 0.0.40
codegen_flags: <defaults>
</compile_context>

<pallas_src>
import math
import numpy as np
import jax
import jax.numpy as jnp
from jax.experimental import pallas as pl
from jax.experimental.pallas import tpu as pltpu

NUM_UNIT = 3          # number of LEConv units
DROP_P = 0.4          # F.dropout(x, p=0.4), training=True
HID = 64              # hidden width
FEAT_PAD = 8          # raw feature dim 5, zero-padded to 8


def ba3motif_kernel(x_ref, mask_ref, adj_ref, deg_ref, pw_ref,
                    emb_w_ref, emb_b_ref, wcat_ref, bcat_ref,
                    l1w_ref, l1b_ref, l2w_ref, l2b_ref,
                    out_ref):
    # node_emb: Linear(5, 64) (feature dim zero-padded to 8; padded rows of W are 0)
    h = jnp.dot(x_ref[...], emb_w_ref[...],
                preferred_element_type=jnp.float32) + emb_b_ref[...]

    # F.dropout(p=0.4, training=True): precomputed keep mask, scaled by 1/(1-p)
    h = h * mask_ref[...] * (1.0 / (1.0 - DROP_P))

    adj = adj_ref[...]        # (n, n) bf16: adj[i, j] = sum of edge weights j -> i
    deg = deg_ref[...]        # (n, 1) f32 : weighted in-degree (computed in glue)

    # LEConv:  out_i = sum_{j in N(i)} w_ji * (lin1(x)_j - lin2(x)_i) + lin3(x)_i
    #                = adj @ lin1(x) - deg * lin2(x) + lin3(x)
    # lin1|lin2|lin3 are fused into one (64, 192) weight; slice at 64-lane offsets.
    for u in range(NUM_UNIT):
        hb = h.astype(jnp.bfloat16)
        y = jnp.dot(hb, wcat_ref[u],
                    preferred_element_type=jnp.float32) + bcat_ref[u]   # (n, 192)
        a = y[:, 0 * HID:1 * HID]
        b = y[:, 1 * HID:2 * HID]
        c = y[:, 2 * HID:3 * HID]
        msg = jnp.dot(adj, a.astype(jnp.bfloat16),
                      preferred_element_type=jnp.float32) - deg * b
        h = jnp.maximum(msg + c, 0.0)                                   # ReLU

    # global_mean_pool: (1, n) pooling row (1/|V_g| on valid node slots) @ h
    g = jnp.dot(pw_ref[...], h, preferred_element_type=jnp.float32)     # (1, 64)

    # prediction head (forward() returns pre-softmax logits)
    p = jnp.dot(g.astype(jnp.bfloat16), l1w_ref[...],
                preferred_element_type=jnp.float32) + l1b_ref[...]
    p = jnp.maximum(p, 0.0)
    out = jnp.dot(p.astype(jnp.bfloat16), l2w_ref[...],
                  preferred_element_type=jnp.float32) + l2b_ref[...]
    out_ref[...] = out


def ba3motif_forward(x, edge_index, edge_attr, batch, num_graphs, params, drop_mask):
    """Host-side glue: block-diagonal densification of the batched graph, then the kernel."""
    N = int(x.shape[0])
    G = int(num_graphs)

    batch_np = np.asarray(batch, np.int64)
    src_np = np.asarray(edge_index[0], np.int64)
    dst_np = np.asarray(edge_index[1], np.int64)
    ew_np = np.asarray(edge_attr, np.float32).reshape(-1)

    counts = np.bincount(batch_np, minlength=G).astype(np.int64)
    n = max(8, int(math.ceil(max(int(counts.max()), 1) / 8) * 8))  # per-graph node pad

    # local slot of each node inside its graph
    pos = np.zeros(N, np.int64)
    seen = np.zeros(G, np.int64)
    for i in range(N):
        gidx = batch_np[i]
        pos[i] = seen[gidx]
        seen[gidx] += 1

    # per-graph dense adjacency (dst, src) and weighted in-degree.
    # PyG Batch semantics: edges never cross graphs (block-diagonal structure).
    eg = batch_np[dst_np]
    adj_blk = np.zeros((G, n, n), np.float32)
    np.add.at(adj_blk, (eg, pos[dst_np], pos[src_np]), ew_np)
    deg_n = np.zeros((N,), np.float32)
    np.add.at(deg_n, dst_np, ew_np)
    deg_blk = np.zeros((G, n, 1), np.float32)
    deg_blk[batch_np, pos, 0] = deg_n

    # node features (padded 5 -> 8) and dropout keep-mask, gathered per graph
    x_np = np.asarray(x, np.float32)
    x_pad = np.zeros((N, FEAT_PAD), np.float32)
    x_pad[:, :x_np.shape[1]] = x_np
    x_blk = np.zeros((G, n, FEAT_PAD), np.float32)
    x_blk[batch_np, pos] = x_pad
    mask_blk = np.zeros((G, n, HID), np.float32)
    mask_blk[batch_np, pos] = np.asarray(drop_mask, np.float32)

    # mean-pool row: 1/|V_g| on valid slots, 0 on padding
    pw_blk = np.zeros((G, 1, n), np.float32)
    pw_blk[batch_np, 0, pos] = 1.0 / np.maximum(counts[batch_np], 1)

    # fuse per-unit LEConv weights: [lin1 | lin2 | lin3] -> (NUM_UNIT, 64, 192)
    wcat = np.concatenate([np.asarray(params["c1w"], np.float32),
                           np.asarray(params["c2w"], np.float32),
                           np.asarray(params["c3w"], np.float32)], axis=-1)
    bcat = np.concatenate([np.asarray(params["c1b"], np.float32),
                           np.zeros((NUM_UNIT, 1, HID), np.float32),  # lin2: bias=False
                           np.asarray(params["c3b"], np.float32)], axis=-1)
    emb_w = np.zeros((FEAT_PAD, HID), np.float32)
    emb_w[:np.asarray(params["emb_w"]).shape[0]] = np.asarray(params["emb_w"], np.float32)

    bf16 = jnp.bfloat16
    args = (
        jnp.asarray(x_blk, bf16),                       # (G, n, 8)
        jnp.asarray(mask_blk, jnp.float32),             # (G, n, 64)
        jnp.asarray(adj_blk, bf16),                     # (G, n, n)
        jnp.asarray(deg_blk, jnp.float32),              # (G, n, 1)
        jnp.asarray(pw_blk, jnp.float32),               # (G, 1, n)
        jnp.asarray(emb_w, bf16),                       # (8, 64)
        jnp.asarray(params["emb_b"], jnp.float32),      # (1, 64)
        jnp.asarray(wcat, bf16),                        # (3, 64, 192)
        jnp.asarray(bcat, jnp.float32),                 # (3, 1, 192)
        jnp.asarray(params["l1w"], bf16),               # (64, 128)
        jnp.asarray(params["l1b"], jnp.float32),        # (1, 128)
        jnp.asarray(params["l2w"], bf16),               # (128, 3)
        jnp.asarray(params["l2b"], jnp.float32),        # (1, 3)
    )

    in_specs = [
        pl.BlockSpec((None, n, FEAT_PAD), lambda g: (g, 0, 0)),        # x
        pl.BlockSpec((None, n, HID), lambda g: (g, 0, 0)),             # dropout mask
        pl.BlockSpec((None, n, n), lambda g: (g, 0, 0)),               # adj
        pl.BlockSpec((None, n, 1), lambda g: (g, 0, 0)),               # deg
        pl.BlockSpec((None, 1, n), lambda g: (g, 0, 0)),               # pool row
        pl.BlockSpec((FEAT_PAD, HID), lambda g: (0, 0)),               # emb_w (resident)
        pl.BlockSpec((1, HID), lambda g: (0, 0)),                      # emb_b
        pl.BlockSpec((NUM_UNIT, HID, 3 * HID), lambda g: (0, 0, 0)),   # fused conv W
        pl.BlockSpec((NUM_UNIT, 1, 3 * HID), lambda g: (0, 0, 0)),     # fused conv b
        pl.BlockSpec((HID, 128), lambda g: (0, 0)),                    # l1w
        pl.BlockSpec((1, 128), lambda g: (0, 0)),                      # l1b
        pl.BlockSpec((128, 3), lambda g: (0, 0)),                      # l2w
        pl.BlockSpec((1, 3), lambda g: (0, 0)),                        # l2b
    ]

    # VMEM budget: double-buffered per-graph blocks + resident weights + headroom
    per_graph_bytes = 2 * (n * FEAT_PAD * 2 + n * HID * 4 + n * n * 2
                           + n * 4 + n * 4 + 3 * 4)
    weight_bytes = (FEAT_PAD * HID * 2 + HID * 4
                    + NUM_UNIT * HID * 3 * HID * 2 + NUM_UNIT * 3 * HID * 4
                    + HID * 128 * 2 + 128 * 4 + 128 * 3 * 2 + 3 * 4)
    vmem_limit = int(min(64 << 20, max(16 << 20,
                                       per_graph_bytes + weight_bytes + (4 << 20))))

    out = pl.pallas_call(
        ba3motif_kernel,
        out_shape=jax.ShapeDtypeStruct((G, 1, 3), jnp.float32),
        grid=(G,),
        in_specs=in_specs,
        out_specs=pl.BlockSpec((None, 1, 3), lambda g: (g, 0, 0)),
        compiler_params=pltpu.CompilerParams(
            dimension_semantics=("parallel",),
            vmem_limit_bytes=vmem_limit),
    )(*args)
    return out.reshape(G, 3)


def init_params(key):
    def lin(k, fin, fout):
        bound = 1.0 / np.sqrt(fin)
        kw, kb = jax.random.split(k)
        w = jax.random.uniform(kw, (fin, fout), jnp.float32, -bound, bound)
        b = jax.random.uniform(kb, (1, fout), jnp.float32, -bound, bound)
        return w, b

    ks = jax.random.split(key, 2 + 3 * NUM_UNIT)
    emb_w, emb_b = lin(ks[0], 5, HID)
    c1w, c1b, c2w, c3w, c3b = [], [], [], [], []
    for u in range(NUM_UNIT):
        w1, b1 = lin(ks[2 + 3 * u + 0], HID, HID)
        w2, _ = lin(ks[2 + 3 * u + 1], HID, HID)     # LEConv lin2 has bias=False
        w3, b3 = lin(ks[2 + 3 * u + 2], HID, HID)
        c1w.append(w1); c1b.append(b1); c2w.append(w2); c3w.append(w3); c3b.append(b3)
    l1w, l1b = lin(ks[1], HID, 128)
    l2w, l2b = lin(jax.random.fold_in(key, 123), 128, 3)
    return dict(emb_w=emb_w, emb_b=emb_b,
                c1w=jnp.stack(c1w), c1b=jnp.stack(c1b), c2w=jnp.stack(c2w),
                c3w=jnp.stack(c3w), c3b=jnp.stack(c3b),
                l1w=l1w, l1b=l1b, l2w=l2w, l2b=l2b)


def ref_forward(x, edge_index, edge_attr, batch, num_graphs, params, drop_mask):
    """Pure-JAX f32 reference with explicit per-edge scatter (validates the kernel)."""
    src, dst = edge_index[0], edge_index[1]
    ew = edge_attr.reshape(-1)
    h = x @ params["emb_w"] + params["emb_b"]
    h = h * drop_mask * (1.0 / (1.0 - DROP_P))
    for u in range(NUM_UNIT):
        a = h @ params["c1w"][u] + params["c1b"][u]
        b = h @ params["c2w"][u]
        c = h @ params["c3w"][u] + params["c3b"][u]
        msg = (a[src] - b[dst]) * ew[:, None]
        agg = jnp.zeros_like(h).at[dst].add(msg)
        h = jnp.maximum(agg + c, 0.0)
    counts = jnp.zeros((num_graphs,), jnp.float32).at[batch].add(1.0)
    g = jnp.zeros((num_graphs, h.shape[1]), jnp.float32).at[batch].add(h) / counts[:, None]
    p = jnp.maximum(g @ params["l1w"] + params["l1b"], 0.0)
    return p @ params["l2w"] + params["l2b"]


if __name__ == "__main__":
    key = jax.random.PRNGKey(0)
    k_x, k_e, k_w, k_d, k_p = jax.random.split(key, 5)

    G = 4                    # graphs in the batch
    n_per = 8                # nodes per graph
    N = G * n_per
    E_per = 24               # edges per graph
    x = jax.random.normal(k_x, (N, 5), jnp.float32)

    # edges stay within each graph (PyG Batch semantics: block-diagonal adjacency)
    edges = []
    for g in range(G):
        kg = jax.random.fold_in(k_e, g)
        edges.append(jax.random.randint(kg, (2, E_per),
                                        g * n_per, (g + 1) * n_per, jnp.int32))
    edge_index = jnp.concatenate(edges, axis=1)
    edge_attr = jax.random.uniform(k_w, (G * E_per, 1), jnp.float32)
    batch = jnp.repeat(jnp.arange(G, dtype=jnp.int32), n_per)

    # deterministic dropout keep-mask (F.dropout default training=True)
    drop_mask = jax.random.bernoulli(k_d, 1.0 - DROP_P, (N, HID)).astype(jnp.float32)

    params = init_params(k_p)

    out = ba3motif_forward(x, edge_index, edge_attr, batch, G, params, drop_mask)
    out = jax.block_until_ready(out)

    ref = ref_forward(x, edge_index, edge_attr, batch, G, params, drop_mask)
    np.testing.assert_allclose(np.asarray(out), np.asarray(ref), rtol=5e-2, atol=5e-2)

    print("KERNEL_OK")
</pallas_src>

<mosaic_0001>
module attributes {stable_mosaic.version = 11 : i64} {
  func.func @ba3motif_kernel(%arg0: i32, %arg1: memref<1x8x8xbf16, #tpu.memory_space<vmem>>, %arg2: memref<1x8x64xf32, #tpu.memory_space<vmem>>, %arg3: memref<1x8x8xbf16, #tpu.memory_space<vmem>>, %arg4: memref<1x8x1xf32, #tpu.memory_space<vmem>>, %arg5: memref<1x1x8xf32, #tpu.memory_space<vmem>>, %arg6: memref<8x64xbf16, #tpu.memory_space<vmem>>, %arg7: memref<1x64xf32, #tpu.memory_space<vmem>>, %arg8: memref<3x64x192xbf16, #tpu.memory_space<vmem>>, %arg9: memref<3x1x192xf32, #tpu.memory_space<vmem>>, %arg10: memref<64x128xbf16, #tpu.memory_space<vmem>>, %arg11: memref<1x128xf32, #tpu.memory_space<vmem>>, %arg12: memref<128x3xbf16, #tpu.memory_space<vmem>>, %arg13: memref<1x3xf32, #tpu.memory_space<vmem>>, %arg14: memref<1x1x3xf32, #tpu.memory_space<vmem>>) attributes {dimension_semantics = [#tpu.dimension_semantics<parallel>], iteration_bounds = array<i64: 4>, scalar_prefetch = 0 : i64, scratch_operands = 0 : i64, tpu.core_type = #tpu.core_type<tc>, window_params = [{transform_indices = @transform_0, window_bounds = array<i64: 1, 8, 8>}, {transform_indices = @transform_1, window_bounds = array<i64: 1, 8, 64>}, {transform_indices = @transform_2, window_bounds = array<i64: 1, 8, 8>}, {transform_indices = @transform_3, window_bounds = array<i64: 1, 8, 1>}, {transform_indices = @transform_4, window_bounds = array<i64: 1, 1, 8>}, {pipeline_mode = #tpu.pipeline_mode<synchronous>, transform_indices = @transform_5, window_bounds = array<i64: 8, 64>}, {pipeline_mode = #tpu.pipeline_mode<synchronous>, transform_indices = @transform_6, window_bounds = array<i64: 1, 64>}, {pipeline_mode = #tpu.pipeline_mode<synchronous>, transform_indices = @transform_7, window_bounds = array<i64: 3, 64, 192>}, {pipeline_mode = #tpu.pipeline_mode<synchronous>, transform_indices = @transform_8, window_bounds = array<i64: 3, 1, 192>}, {pipeline_mode = #tpu.pipeline_mode<synchronous>, transform_indices = @transform_9, window_bounds = array<i64: 64, 128>}, {pipeline_mode = #tpu.pipeline_mode<synchronous>, transform_indices = @transform_10, window_bounds = array<i64: 1, 128>}, {pipeline_mode = #tpu.pipeline_mode<synchronous>, transform_indices = @transform_11, window_bounds = array<i64: 128, 3>}, {pipeline_mode = #tpu.pipeline_mode<synchronous>, transform_indices = @transform_12, window_bounds = array<i64: 1, 3>}, {transform_indices = @transform_13, window_bounds = array<i64: 1, 1, 3>}]} {
    %c0 = arith.constant 0 : index
    %c0_0 = arith.constant 0 : index
    %c0_1 = arith.constant 0 : index
    %0 = vector.load %arg1[%c0, %c0_0, %c0_1] : memref<1x8x8xbf16, #tpu.memory_space<vmem>>, vector<1x8x8xbf16>
    %1 = vector.shape_cast %0 : vector<1x8x8xbf16> to vector<8x8xbf16>
    %c0_2 = arith.constant 0 : index
    %c0_3 = arith.constant 0 : index
    %2 = vector.load %arg6[%c0_2, %c0_3] : memref<8x64xbf16, #tpu.memory_space<vmem>>, vector<8x64xbf16>
    %cst = arith.constant dense<0.000000e+00> : vector<8x64xf32>
    %3 = tpu.matmul %1, %2, %cst {dimension_numbers = #tpu.dot_dimension_numbers<[1], [0], [0], [1], [0, 0, 1, 1], [], []>} : vector<8x8xbf16>, vector<8x64xbf16>, vector<8x64xf32> -> vector<8x64xf32>
    %c0_4 = arith.constant 0 : index
    %c0_5 = arith.constant 0 : index
    %4 = vector.load %arg7[%c0_4, %c0_5] : memref<1x64xf32, #tpu.memory_space<vmem>>, vector<1x64xf32>
    %5 = vector.broadcast %4 : vector<1x64xf32> to vector<8x64xf32>
    %6 = arith.addf %3, %5 : vector<8x64xf32>
    %c0_6 = arith.constant 0 : index
    %c0_7 = arith.constant 0 : index
    %c0_8 = arith.constant 0 : index
    %7 = vector.load %arg2[%c0_6, %c0_7, %c0_8] : memref<1x8x64xf32, #tpu.memory_space<vmem>>, vector<1x8x64xf32>
    %8 = vector.shape_cast %7 : vector<1x8x64xf32> to vector<8x64xf32>
    %9 = arith.mulf %6, %8 : vector<8x64xf32>
    %cst_9 = arith.constant 1.66666663 : f32
    %10 = vector.broadcast %cst_9 : f32 to vector<8x64xf32>
    %11 = arith.mulf %9, %10 : vector<8x64xf32>
    %c0_10 = arith.constant 0 : index
    %c0_11 = arith.constant 0 : index
    %c0_12 = arith.constant 0 : index
    %12 = vector.load %arg3[%c0_10, %c0_11, %c0_12] : memref<1x8x8xbf16, #tpu.memory_space<vmem>>, vector<1x8x8xbf16>
    %13 = vector.shape_cast %12 : vector<1x8x8xbf16> to vector<8x8xbf16>
    %c0_13 = arith.constant 0 : index
    %c0_14 = arith.constant 0 : index
    %c0_15 = arith.constant 0 : index
    %14 = vector.load %arg4[%c0_13, %c0_14, %c0_15] : memref<1x8x1xf32, #tpu.memory_space<vmem>>, vector<1x8x1xf32>
    %15 = vector.shape_cast %14 : vector<1x8x1xf32> to vector<8x1xf32>
    %16 = arith.truncf %11 : vector<8x64xf32> to vector<8x64xbf16>
    %c0_16 = arith.constant 0 : index
    %c0_17 = arith.constant 0 : index
    %c0_18 = arith.constant 0 : index
    %17 = vector.load %arg8[%c0_16, %c0_17, %c0_18] : memref<3x64x192xbf16, #tpu.memory_space<vmem>>, vector<1x64x192xbf16>
    %18 = vector.shape_cast %17 : vector<1x64x192xbf16> to vector<64x192xbf16>
    %cst_19 = arith.constant dense<0.000000e+00> : vector<8x192xf32>
    %19 = tpu.matmul %16, %18, %cst_19 {dimension_numbers = #tpu.dot_dimension_numbers<[1], [0], [0], [1], [0, 0, 1, 1], [], []>} : vector<8x64xbf16>, vector<64x192xbf16>, vector<8x192xf32> -> vector<8x192xf32>
    %c0_20 = arith.constant 0 : index
    %c0_21 = arith.constant 0 : index
    %c0_22 = arith.constant 0 : index
    %20 = vector.load %arg9[%c0_20, %c0_21, %c0_22] : memref<3x1x192xf32, #tpu.memory_space<vmem>>, vector<1x1x192xf32>
    %21 = vector.shape_cast %20 : vector<1x1x192xf32> to vector<1x192xf32>
    %22 = vector.broadcast %21 : vector<1x192xf32> to vector<8x192xf32>
    %23 = arith.addf %19, %22 : vector<8x192xf32>
    %24 = vector.extract_strided_slice %23 {offsets = [0, 0], sizes = [8, 64], strides = [1, 1]} : vector<8x192xf32> to vector<8x64xf32>
    %25 = vector.extract_strided_slice %23 {offsets = [0, 64], sizes = [8, 64], strides = [1, 1]} : vector<8x192xf32> to vector<8x64xf32>
    %26 = vector.extract_strided_slice %23 {offsets = [0, 128], sizes = [8, 64], strides = [1, 1]} : vector<8x192xf32> to vector<8x64xf32>
    %27 = arith.truncf %24 : vector<8x64xf32> to vector<8x64xbf16>
    %cst_23 = arith.constant dense<0.000000e+00> : vector<8x64xf32>
    %28 = tpu.matmul %13, %27, %cst_23 {dimension_numbers = #tpu.dot_dimension_numbers<[1], [0], [0], [1], [0, 0, 1, 1], [], []>} : vector<8x8xbf16>, vector<8x64xbf16>, vector<8x64xf32> -> vector<8x64xf32>
    %29 = vector.broadcast %15 : vector<8x1xf32> to vector<8x64xf32>
    %30 = arith.mulf %29, %25 : vector<8x64xf32>
    %31 = arith.subf %28, %30 : vector<8x64xf32>
    %32 = arith.addf %31, %26 : vector<8x64xf32>
    %cst_24 = arith.constant 0.000000e+00 : f32
    %33 = vector.broadcast %cst_24 : f32 to vector<8x64xf32>
    %34 = arith.maximumf %32, %33 : vector<8x64xf32>
    %35 = arith.truncf %34 : vector<8x64xf32> to vector<8x64xbf16>
    %c1 = arith.constant 1 : index
    %c0_25 = arith.constant 0 : index
    %c0_26 = arith.constant 0 : index
    %36 = vector.load %arg8[%c1, %c0_25, %c0_26] : memref<3x64x192xbf16, #tpu.memory_space<vmem>>, vector<1x64x192xbf16>
    %37 = vector.shape_cast %36 : vector<1x64x192xbf16> to vector<64x192xbf16>
    %cst_27 = arith.constant dense<0.000000e+00> : vector<8x192xf32>
    %38 = tpu.matmul %35, %37, %cst_27 {dimension_numbers = #tpu.dot_dimension_numbers<[1], [0], [0], [1], [0, 0, 1, 1], [], []>} : vector<8x64xbf16>, vector<64x192xbf16>, vector<8x192xf32> -> vector<8x192xf32>
    %c1_28 = arith.constant 1 : index
    %c0_29 = arith.constant 0 : index
    %c0_30 = arith.constant 0 : index
    %39 = vector.load %arg9[%c1_28, %c0_29, %c0_30] : memref<3x1x192xf32, #tpu.memory_space<vmem>>, vector<1x1x192xf32>
    %40 = vector.shape_cast %39 : vector<1x1x192xf32> to vector<1x192xf32>
    %41 = vector.broadcast %40 : vector<1x192xf32> to vector<8x192xf32>
    %42 = arith.addf %38, %41 : vector<8x192xf32>
    %43 = vector.extract_strided_slice %42 {offsets = [0, 0], sizes = [8, 64], strides = [1, 1]} : vector<8x192xf32> to vector<8x64xf32>
    %44 = vector.extract_strided_slice %42 {offsets = [0, 64], sizes = [8, 64], strides = [1, 1]} : vector<8x192xf32> to vector<8x64xf32>
    %45 = vector.extract_strided_slice %42 {offsets = [0, 128], sizes = [8, 64], strides = [1, 1]} : vector<8x192xf32> to vector<8x64xf32>
    %46 = arith.truncf %43 : vector<8x64xf32> to vector<8x64xbf16>
    %cst_31 = arith.constant dense<0.000000e+00> : vector<8x64xf32>
    %47 = tpu.matmul %13, %46, %cst_31 {dimension_numbers = #tpu.dot_dimension_numbers<[1], [0], [0], [1], [0, 0, 1, 1], [], []>} : vector<8x8xbf16>, vector<8x64xbf16>, vector<8x64xf32> -> vector<8x64xf32>
    %48 = vector.broadcast %15 : vector<8x1xf32> to vector<8x64xf32>
    %49 = arith.mulf %48, %44 : vector<8x64xf32>
    %50 = arith.subf %47, %49 : vector<8x64xf32>
    %51 = arith.addf %50, %45 : vector<8x64xf32>
    %cst_32 = arith.constant 0.000000e+00 : f32
    %52 = vector.broadcast %cst_32 : f32 to vector<8x64xf32>
    %53 = arith.maximumf %51, %52 : vector<8x64xf32>
    %54 = arith.truncf %53 : vector<8x64xf32> to vector<8x64xbf16>
    %c2 = arith.constant 2 : index
    %c0_33 = arith.constant 0 : index
    %c0_34 = arith.constant 0 : index
    %55 = vector.load %arg8[%c2, %c0_33, %c0_34] : memref<3x64x192xbf16, #tpu.memory_space<vmem>>, vector<1x64x192xbf16>
    %56 = vector.shape_cast %55 : vector<1x64x192xbf16> to vector<64x192xbf16>
    %cst_35 = arith.constant dense<0.000000e+00> : vector<8x192xf32>
    %57 = tpu.matmul %54, %56, %cst_35 {dimension_numbers = #tpu.dot_dimension_numbers<[1], [0], [0], [1], [0, 0, 1, 1], [], []>} : vector<8x64xbf16>, vector<64x192xbf16>, vector<8x192xf32> -> vector<8x192xf32>
    %c2_36 = arith.constant 2 : index
    %c0_37 = arith.constant 0 : index
    %c0_38 = arith.constant 0 : index
    %58 = vector.load %arg9[%c2_36, %c0_37, %c0_38] : memref<3x1x192xf32, #tpu.memory_space<vmem>>, vector<1x1x192xf32>
    %59 = vector.shape_cast %58 : vector<1x1x192xf32> to vector<1x192xf32>
    %60 = vector.broadcast %59 : vector<1x192xf32> to vector<8x192xf32>
    %61 = arith.addf %57, %60 : vector<8x192xf32>
    %62 = vector.extract_strided_slice %61 {offsets = [0, 0], sizes = [8, 64], strides = [1, 1]} : vector<8x192xf32> to vector<8x64xf32>
    %63 = vector.extract_strided_slice %61 {offsets = [0, 64], sizes = [8, 64], strides = [1, 1]} : vector<8x192xf32> to vector<8x64xf32>
    %64 = vector.extract_strided_slice %61 {offsets = [0, 128], sizes = [8, 64], strides = [1, 1]} : vector<8x192xf32> to vector<8x64xf32>
    %65 = arith.truncf %62 : vector<8x64xf32> to vector<8x64xbf16>
    %cst_39 = arith.constant dense<0.000000e+00> : vector<8x64xf32>
    %66 = tpu.matmul %13, %65, %cst_39 {dimension_numbers = #tpu.dot_dimension_numbers<[1], [0], [0], [1], [0, 0, 1, 1], [], []>} : vector<8x8xbf16>, vector<8x64xbf16>, vector<8x64xf32> -> vector<8x64xf32>
    %67 = vector.broadcast %15 : vector<8x1xf32> to vector<8x64xf32>
    %68 = arith.mulf %67, %63 : vector<8x64xf32>
    %69 = arith.subf %66, %68 : vector<8x64xf32>
    %70 = arith.addf %69, %64 : vector<8x64xf32>
    %cst_40 = arith.constant 0.000000e+00 : f32
    %71 = vector.broadcast %cst_40 : f32 to vector<8x64xf32>
    %72 = arith.maximumf %70, %71 : vector<8x64xf32>
    %c0_41 = arith.constant 0 : index
    %c0_42 = arith.constant 0 : index
    %c0_43 = arith.constant 0 : index
    %73 = vector.load %arg5[%c0_41, %c0_42, %c0_43] : memref<1x1x8xf32, #tpu.memory_space<vmem>>, vector<1x1x8xf32>
    %74 = vector.shape_cast %73 : vector<1x1x8xf32> to vector<1x8xf32>
    %cst_44 = arith.constant dense<0.000000e+00> : vector<1x64xf32>
    %75 = tpu.matmul %74, %72, %cst_44 {dimension_numbers = #tpu.dot_dimension_numbers<[1], [0], [0], [1], [0, 0, 1, 1], [], []>} : vector<1x8xf32>, vector<8x64xf32>, vector<1x64xf32> -> vector<1x64xf32>
    %76 = arith.truncf %75 : vector<1x64xf32> to vector<1x64xbf16>
    %c0_45 = arith.constant 0 : index
    %c0_46 = arith.constant 0 : index
    %77 = vector.load %arg10[%c0_45, %c0_46] : memref<64x128xbf16, #tpu.memory_space<vmem>>, vector<64x128xbf16>
    %cst_47 = arith.constant dense<0.000000e+00> : vector<1x128xf32>
    %78 = tpu.matmul %76, %77, %cst_47 {dimension_numbers = #tpu.dot_dimension_numbers<[1], [0], [0], [1], [0, 0, 1, 1], [], []>} : vector<1x64xbf16>, vector<64x128xbf16>, vector<1x128xf32> -> vector<1x128xf32>
    %c0_48 = arith.constant 0 : index
    %c0_49 = arith.constant 0 : index
    %79 = vector.load %arg11[%c0_48, %c0_49] : memref<1x128xf32, #tpu.memory_space<vmem>>, vector<1x128xf32>
    %80 = arith.addf %78, %79 : vector<1x128xf32>
    %cst_50 = arith.constant 0.000000e+00 : f32
    %81 = vector.broadcast %cst_50 : f32 to vector<1x128xf32>
    %82 = arith.maximumf %80, %81 : vector<1x128xf32>
    %83 = arith.truncf %82 : vector<1x128xf32> to vector<1x128xbf16>
    %c0_51 = arith.constant 0 : index
    %c0_52 = arith.constant 0 : index
    %84 = vector.load %arg12[%c0_51, %c0_52] : memref<128x3xbf16, #tpu.memory_space<vmem>>, vector<128x3xbf16>
    %cst_53 = arith.constant dense<0.000000e+00> : vector<1x3xf32>
    %85 = tpu.matmul %83, %84, %cst_53 {dimension_numbers = #tpu.dot_dimension_numbers<[1], [0], [0], [1], [0, 0, 1, 1], [], []>} : vector<1x128xbf16>, vector<128x3xbf16>, vector<1x3xf32> -> vector<1x3xf32>
    %c0_54 = arith.constant 0 : index
    %c0_55 = arith.constant 0 : index
    %86 = vector.load %arg13[%c0_54, %c0_55] : memref<1x3xf32, #tpu.memory_space<vmem>>, vector<1x3xf32>
    %87 = arith.addf %85, %86 : vector<1x3xf32>
    %c0_56 = arith.constant 0 : index
    %c0_57 = arith.constant 0 : index
    %c0_58 = arith.constant 0 : index
    %88 = vector.load %arg14[%c0_56, %c0_57, %c0_58] : memref<1x1x3xf32, #tpu.memory_space<vmem>>, vector<1x1x3xf32>
    %89 = vector.shape_cast %88 : vector<1x1x3xf32> to vector<1x3xf32>
    %90 = vector.shape_cast %87 : vector<1x3xf32> to vector<1x1x3xf32>
    tpu.vector_store %arg14[%c0_56, %c0_57, %c0_58], %90 {strides = array<i32>} : memref<1x1x3xf32, #tpu.memory_space<vmem>>, vector<1x1x3xf32>,
    return
  }
  func.func @transform_0(%arg0: i32) -> (i32, i32, i32) {
    %c0_i32 = arith.constant 0 : i32
    %c0_i32_0 = arith.constant 0 : i32
    %c0_i32_1 = arith.constant 0 : i32
    return %arg0, %c0_i32, %c0_i32_0 : i32, i32, i32
  }
  func.func @transform_1(%arg0: i32) -> (i32, i32, i32) {
    %c0_i32 = arith.constant 0 : i32
    %c0_i32_0 = arith.constant 0 : i32
    %c0_i32_1 = arith.constant 0 : i32
    return %arg0, %c0_i32, %c0_i32_0 : i32, i32, i32
  }
  func.func @transform_2(%arg0: i32) -> (i32, i32, i32) {
    %c0_i32 = arith.constant 0 : i32
    %c0_i32_0 = arith.constant 0 : i32
    %c0_i32_1 = arith.constant 0 : i32
    return %arg0, %c0_i32, %c0_i32_0 : i32, i32, i32
  }
  func.func @transform_3(%arg0: i32) -> (i32, i32, i32) {
    %c0_i32 = arith.constant 0 : i32
    %c0_i32_0 = arith.constant 0 : i32
    %c0_i32_1 = arith.constant 0 : i32
    return %arg0, %c0_i32, %c0_i32_0 : i32, i32, i32
  }
  func.func @transform_4(%arg0: i32) -> (i32, i32, i32) {
    %c0_i32 = arith.constant 0 : i32
    %c0_i32_0 = arith.constant 0 : i32
    %c0_i32_1 = arith.constant 0 : i32
    return %arg0, %c0_i32, %c0_i32_0 : i32, i32, i32
  }
  func.func @transform_5(%arg0: i32) -> (i32, i32) {
    %c0_i32 = arith.constant 0 : i32
    %c0_i32_0 = arith.constant 0 : i32
    %c0_i32_1 = arith.constant 0 : i32
    return %c0_i32, %c0_i32_0 : i32, i32
  }
  func.func @transform_6(%arg0: i32) -> (i32, i32) {
    %c0_i32 = arith.constant 0 : i32
    %c0_i32_0 = arith.constant 0 : i32
    %c0_i32_1 = arith.constant 0 : i32
    return %c0_i32, %c0_i32_0 : i32, i32
  }
  func.func @transform_7(%arg0: i32) -> (i32, i32, i32) {
    %c0_i32 = arith.constant 0 : i32
    %c0_i32_0 = arith.constant 0 : i32
    %c0_i32_1 = arith.constant 0 : i32
    %c0_i32_2 = arith.constant 0 : i32
    return %c0_i32, %c0_i32_0, %c0_i32_1 : i32, i32, i32
  }
  func.func @transform_8(%arg0: i32) -> (i32, i32, i32) {
    %c0_i32 = arith.constant 0 : i32
    %c0_i32_0 = arith.constant 0 : i32
    %c0_i32_1 = arith.constant 0 : i32
    %c0_i32_2 = arith.constant 0 : i32
    return %c0_i32, %c0_i32_0, %c0_i32_1 : i32, i32, i32
  }
  func.func @transform_9(%arg0: i32) -> (i32, i32) {
    %c0_i32 = arith.constant 0 : i32
    %c0_i32_0 = arith.constant 0 : i32
    %c0_i32_1 = arith.constant 0 : i32
    return %c0_i32, %c0_i32_0 : i32, i32
  }
  func.func @transform_10(%arg0: i32) -> (i32, i32) {
    %c0_i32 = arith.constant 0 : i32
    %c0_i32_0 = arith.constant 0 : i32
    %c0_i32_1 = arith.constant 0 : i32
    return %c0_i32, %c0_i32_0 : i32, i32
  }
  func.func @transform_11(%arg0: i32) -> (i32, i32) {
    %c0_i32 = arith.constant 0 : i32
    %c0_i32_0 = arith.constant 0 : i32
    %c0_i32_1 = arith.constant 0 : i32
    return %c0_i32, %c0_i32_0 : i32, i32
  }
  func.func @transform_12(%arg0: i32) -> (i32, i32) {
    %c0_i32 = arith.constant 0 : i32
    %c0_i32_0 = arith.constant 0 : i32
    %c0_i32_1 = arith.constant 0 : i32
    return %c0_i32, %c0_i32_0 : i32, i32
  }
  func.func @transform_13(%arg0: i32) -> (i32, i32, i32) {
    %c0_i32 = arith.constant 0 : i32
    %c0_i32_0 = arith.constant 0 : i32
    %c0_i32_1 = arith.constant 0 : i32
    return %arg0, %c0_i32, %c0_i32_0 : i32, i32, i32
  }
}

</mosaic_0001>

<llo_original>
// kernel: tpu_custom_call.1
$region0: #{tpu_custom_call.1}
  #allocation0 [shape = 'u32[]', space=smem, size = 0x4, offset = 0x4, fixed_abs, tag = 'smem constant byte address 0x4 - core index']
  #allocation1 [shape = 'u32[144,128]{1,0:T(1,128)}', space=vmem, size = 0x12000, scoped, tag = 'internal scratch']
  %s0 = inlined_call_operand.vmem [shape: bf16[4,8,8], index: 0, kind: input, shape index: {}]
  %s1 = inlined_call_operand.vmem [shape: f32[4,8,64], index: 1, kind: input, shape index: {}]
  %s2 = inlined_call_operand.vmem [shape: bf16[4,8,8], index: 2, kind: input, shape index: {}]
  %s3 = inlined_call_operand.vmem [shape: f32[4,8,1], index: 3, kind: input, shape index: {}]
  %s4 = inlined_call_operand.hbm [shape: f32[4,1,8], index: 4, kind: input, shape index: {}]
  %s5 = inlined_call_operand.vmem [shape: bf16[8,64], index: 5, kind: input, shape index: {}]
  %s6 = inlined_call_operand.hbm [shape: f32[1,64], index: 6, kind: input, shape index: {}]
  %s7 = inlined_call_operand.hbm [shape: bf16[3,64,192], index: 7, kind: input, shape index: {}]
  %s8 = inlined_call_operand.vmem [shape: f32[3,1,192], index: 8, kind: input, shape index: {}]
  %s9 = inlined_call_operand.vmem [shape: bf16[64,128], index: 9, kind: input, shape index: {}]
  %s10 = inlined_call_operand.vmem [shape: f32[1,128], index: 10, kind: input, shape index: {}]
  %s11 = inlined_call_operand.vmem [shape: bf16[128,3], index: 11, kind: input, shape index: {}]
  %s12 = inlined_call_operand.vmem [shape: f32[1,3], index: 12, kind: input, shape index: {}]
  %s13 = inlined_call_operand.vmem [shape: f32[4,1,3], index: 13, kind: output, shape index: {}]
  %s14 = sld [smem:[#allocation0]]
  $region97: #{tpu_custom_call.1} parent=0
    _
  %s16 = ssub.s32 1, %s14
  %s17 = scalar_select 0, %s16, %s14
  $region1: #{tpu_custom_call.1} parent=0
    #allocation2 [shape = 'u8[1024]{0}', space=vmem, size = 0x400, scoped, tag = 'input window, operand 4']
    #allocation3 [shape = 's32[2]{0}', space=sflag, size = 0x8, scoped, tag = 'scoped memory for tpu_custom_call.1']
    #allocation4 [shape = 'u8[512]{0}', space=vmem, size = 0x400, scoped, tag = 'input window, operand 6, single buffered']
    #allocation5 [shape = 's32[1]{0}', space=sflag, size = 0x4, scoped, tag = 'scoped memory for tpu_custom_call.1']
    #allocation6 [shape = 'u8[98304]{0}', space=vmem, size = 0x18000, scoped, tag = 'input window, operand 7, single buffered']
    %18 = vsyncpa [#allocation3], 0
    %s19 = scalar_lea.sflag [#allocation3], 1
    %20 = vsyncpa %s19, 0
    %21 = vsyncpa [#allocation5], 0
    loop: start=0, step=1, limit=6
    $region2: #{tpu_custom_call.1} parent=1 // loop_pre_header
      _
    $region3: #{tpu_custom_call.1} parent=1 // loop_header
      %s23 = sphi 0, %s27
      %p24 = scmp.ge.s32.totalorder %s23, 6
      %s33 = sphi 0, %s35
      %s36 = sphi 0, %s33
      %s37 = sphi 0, %s36
      %s53 = sphi 0, %s37
      %s59 = sphi 0, %s61
      %s62 = sphi 0, %s59
      %s63 = sphi 0, %s62
      %s79 = sphi 0, %s63
      %s85 = sphi 0, %s87
      %s88 = sphi 0, %s85
      %s89 = sphi 0, %s88
      %s105 = sphi 0, %s89
      %s111 = sphi 0, %s113
      %s114 = sphi 0, %s111
      %s115 = sphi 0, %s114
      %s131 = sphi 0, %s115
      %s137 = sphi 0, %s139
      %s140 = sphi 0, %s137
      %s141 = sphi 0, %s140
      %s157 = sphi 0, %s141
      %s161 = sphi 0, %s161
      %s163 = sphi 0, %s161
      %s164 = sphi 0, %s163
      %s178 = sphi 0, %s164
      %s182 = sphi 0, %s182
      %s184 = sphi 0, %s182
      %s185 = sphi 0, %s184
      %s199 = sphi 0, %s185
      %s203 = sphi 0, %s203
      %s205 = sphi 0, %s203
      %s206 = sphi 0, %s205
      %s220 = sphi 0, %s206
      %s224 = sphi 0, %s224
      %s226 = sphi 0, %s224
      %s227 = sphi 0, %s226
      %s241 = sphi 0, %s227
      %s245 = sphi 0, %s245
      %s247 = sphi 0, %s245
      %s248 = sphi 0, %s247
      %s262 = sphi 0, %s248
      %s266 = sphi 0, %s266
      %s268 = sphi 0, %s266
      %s269 = sphi 0, %s268
      %s283 = sphi 0, %s269
      %s287 = sphi 0, %s287
      %s289 = sphi 0, %s287
      %s290 = sphi 0, %s289
      %s304 = sphi 0, %s290
      %s308 = sphi 0, %s308
      %s310 = sphi 0, %s308
      %s311 = sphi 0, %s310
      %s325 = sphi 0, %s311
      %s331 = sphi 0, %s333
      %s334 = sphi 0, %s331
      %s335 = sphi 0, %s334
      %s351 = sphi 0, %s335
    $region4: #{tpu_custom_call.1} parent=1 // loop_header_branch
      %26 = sbr.rel (%p24) target = $region8
    $region5: #{tpu_custom_call.1} parent=1 // loop_body
      %s28 = ssub.s32 %s23, 1
      %s29 = ssub.s32 %s23, 2
      %s30 = sadd.s32 %s23, 1
      %s31 = ssub.s32 %s23, %s30
      %p32 = scmp.eq.s32.totalorder %s31, 0
      %s34 = sadd.s32 %s33, 1
      %s35 = scalar_select %p32, %s33, %s34
      %p38 = pneg %p32
      %p39 = scmp.eq.s32.totalorder %s23, 3
      %p40 = por %p38, %p39
      %p41 = scmp.ne.s32.totalorder %s33, %s36
      %p42 = scmp.eq.s32.totalorder %s23, 0
      %p43 = por %p41, %p42
      %p44 = scmp.ne.s32.totalorder %s33, %s36
      %p45 = scmp.eq.s32.totalorder %s28, 3
      %p46 = por %p44, %p45
      %p47 = scmp.ne.s32.totalorder %s36, %s37
      %p48 = scmp.eq.s32.totalorder %s28, 0
      %p49 = por %p47, %p48
      %p50 = scmp.ne.s32.totalorder %s36, %s37
      %p51 = scmp.eq.s32.totalorder %s29, 3
      %p52 = por %p50, %p51
      %p54 = scmp.ne.s32.totalorder %s37, %s53
      %p55 = scmp.eq.s32.totalorder %s29, 0
      %p56 = por %p54, %p55
      %s57 = ssub.s32 %s23, %s30
      %p58 = scmp.eq.s32.totalorder %s57, 0
      %s60 = sadd.s32 %s59, 1
      %s61 = scalar_select %p58, %s59, %s60
      %p64 = pneg %p58
      %p65 = scmp.eq.s32.totalorder %s23, 3
      %p66 = por %p64, %p65
      %p67 = scmp.ne.s32.totalorder %s59, %s62
      %p68 = scmp.eq.s32.totalorder %s23, 0
      %p69 = por %p67, %p68
      %p70 = scmp.ne.s32.totalorder %s59, %s62
      %p71 = scmp.eq.s32.totalorder %s28, 3
      %p72 = por %p70, %p71
      %p73 = scmp.ne.s32.totalorder %s62, %s63
      %p74 = scmp.eq.s32.totalorder %s28, 0
      %p75 = por %p73, %p74
      %p76 = scmp.ne.s32.totalorder %s62, %s63
      %p77 = scmp.eq.s32.totalorder %s29, 3
      %p78 = por %p76, %p77
      %p80 = scmp.ne.s32.totalorder %s63, %s79
      %p81 = scmp.eq.s32.totalorder %s29, 0
      %p82 = por %p80, %p81
      %s83 = ssub.s32 %s23, %s30
      %p84 = scmp.eq.s32.totalorder %s83, 0
      %s86 = sadd.s32 %s85, 1
      %s87 = scalar_select %p84, %s85, %s86
      %p90 = pneg %p84
      %p91 = scmp.eq.s32.totalorder %s23, 3
      %p92 = por %p90, %p91
      %p93 = scmp.ne.s32.totalorder %s85, %s88
      %p94 = scmp.eq.s32.totalorder %s23, 0
      %p95 = por %p93, %p94
      %p96 = scmp.ne.s32.totalorder %s85, %s88
      %p97 = scmp.eq.s32.totalorder %s28, 3
      %p98 = por %p96, %p97
      %p99 = scmp.ne.s32.totalorder %s88, %s89
      %p100 = scmp.eq.s32.totalorder %s28, 0
      %p101 = por %p99, %p100
      %p102 = scmp.ne.s32.totalorder %s88, %s89
      %p103 = scmp.eq.s32.totalorder %s29, 3
      %p104 = por %p102, %p103
      %p106 = scmp.ne.s32.totalorder %s89, %s105
      %p107 = scmp.eq.s32.totalorder %s29, 0
      %p108 = por %p106, %p107
      %s109 = ssub.s32 %s23, %s30
      %p110 = scmp.eq.s32.totalorder %s109, 0
      %s112 = sadd.s32 %s111, 1
      %s113 = scalar_select %p110, %s111, %s112
      %p116 = pneg %p110
      %p117 = scmp.eq.s32.totalorder %s23, 3
      %p118 = por %p116, %p117
      %p119 = scmp.ne.s32.totalorder %s111, %s114
      %p120 = scmp.eq.s32.totalorder %s23, 0
      %p121 = por %p119, %p120
      %p122 = scmp.ne.s32.totalorder %s111, %s114
      %p123 = scmp.eq.s32.totalorder %s28, 3
      %p124 = por %p122, %p123
      %p125 = scmp.ne.s32.totalorder %s114, %s115
      %p126 = scmp.eq.s32.totalorder %s28, 0
      %p127 = por %p125, %p126
      %p128 = scmp.ne.s32.totalorder %s114, %s115
      %p129 = scmp.eq.s32.totalorder %s29, 3
      %p130 = por %p128, %p129
      %p132 = scmp.ne.s32.totalorder %s115, %s131
      %p133 = scmp.eq.s32.totalorder %s29, 0
      %p134 = por %p132, %p133
      %s135 = ssub.s32 %s23, %s30
      %p136 = scmp.eq.s32.totalorder %s135, 0
      %s138 = sadd.s32 %s137, 1
      %s139 = scalar_select %p136, %s137, %s138
      %p142 = pneg %p136
      %p143 = scmp.eq.s32.totalorder %s23, 3
      %p144 = por %p142, %p143
      %p145 = scmp.ne.s32.totalorder %s137, %s140
      %p146 = scmp.eq.s32.totalorder %s23, 0
      %p147 = por %p145, %p146
      %p148 = scmp.ne.s32.totalorder %s137, %s140
      %p149 = scmp.eq.s32.totalorder %s28, 3
      %p150 = por %p148, %p149
      %p151 = scmp.ne.s32.totalorder %s140, %s141
      %p152 = scmp.eq.s32.totalorder %s28, 0
      %p153 = por %p151, %p152
      %p154 = scmp.ne.s32.totalorder %s140, %s141
      %p155 = scmp.eq.s32.totalorder %s29, 3
      %p156 = por %p154, %p155
      %p158 = scmp.ne.s32.totalorder %s141, %s157
      %p159 = scmp.eq.s32.totalorder %s29, 0
      %p160 = por %p158, %p159
      %s162 = sadd.s32 %s161, 1
      %p165 = scmp.eq.s32.totalorder %s23, 3
      %p166 = scmp.ne.s32.totalorder %s161, %s163
      %p167 = scmp.eq.s32.totalorder %s23, 0
      %p168 = por %p166, %p167
      %p169 = scmp.ne.s32.totalorder %s161, %s163
      %p170 = scmp.eq.s32.totalorder %s28, 3
      %p171 = por %p169, %p170
      %p172 = scmp.ne.s32.totalorder %s163, %s164
      %p173 = scmp.eq.s32.totalorder %s28, 0
      %p174 = por %p172, %p173
      %p175 = scmp.ne.s32.totalorder %s163, %s164
      %p176 = scmp.eq.s32.totalorder %s29, 3
      %p177 = por %p175, %p176
      %p179 = scmp.ne.s32.totalorder %s164, %s178
      %p180 = scmp.eq.s32.totalorder %s29, 0
      %p181 = por %p179, %p180
      %s183 = sadd.s32 %s182, 1
      %p186 = scmp.eq.s32.totalorder %s23, 3
      %p187 = scmp.ne.s32.totalorder %s182, %s184
      %p188 = scmp.eq.s32.totalorder %s23, 0
      %p189 = por %p187, %p188
      %p190 = scmp.ne.s32.totalorder %s182, %s184
      %p191 = scmp.eq.s32.totalorder %s28, 3
      %p192 = por %p190, %p191
      %p193 = scmp.ne.s32.totalorder %s184, %s185
      %p194 = scmp.eq.s32.totalorder %s28, 0
      %p195 = por %p193, %p194
      %p196 = scmp.ne.s32.totalorder %s184, %s185
      %p197 = scmp.eq.s32.totalorder %s29, 3
      %p198 = por %p196, %p197
      %p200 = scmp.ne.s32.totalorder %s185, %s199
      %p201 = scmp.eq.s32.totalorder %s29, 0
      %p202 = por %p200, %p201
      %s204 = sadd.s32 %s203, 1
      %p207 = scmp.eq.s32.totalorder %s23, 3
      %p208 = scmp.ne.s32.totalorder %s203, %s205
      %p209 = scmp.eq.s32.totalorder %s23, 0
      %p210 = por %p208, %p209
      %p211 = scmp.ne.s32.totalorder %s203, %s205
      %p212 = scmp.eq.s32.totalorder %s28, 3
      %p213 = por %p211, %p212
      %p214 = scmp.ne.s32.totalorder %s205, %s206
      %p215 = scmp.eq.s32.totalorder %s28, 0
      %p216 = por %p214, %p215
      %p217 = scmp.ne.s32.totalorder %s205, %s206
      %p218 = scmp.eq.s32.totalorder %s29, 3
      %p219 = por %p217, %p218
      %p221 = scmp.ne.s32.totalorder %s206, %s220
      %p222 = scmp.eq.s32.totalorder %s29, 0
      %p223 = por %p221, %p222
      %s225 = sadd.s32 %s224, 1
      %p228 = scmp.eq.s32.totalorder %s23, 3
      %p229 = scmp.ne.s32.totalorder %s224, %s226
      %p230 = scmp.eq.s32.totalorder %s23, 0
      %p231 = por %p229, %p230
      %p232 = scmp.ne.s32.totalorder %s224, %s226
      %p233 = scmp.eq.s32.totalorder %s28, 3
      %p234 = por %p232, %p233
      %p235 = scmp.ne.s32.totalorder %s226, %s227
      %p236 = scmp.eq.s32.totalorder %s28, 0
      %p237 = por %p235, %p236
      %p238 = scmp.ne.s32.totalorder %s226, %s227
      %p239 = scmp.eq.s32.totalorder %s29, 3
      %p240 = por %p238, %p239
      %p242 = scmp.ne.s32.totalorder %s227, %s241
      %p243 = scmp.eq.s32.totalorder %s29, 0
      %p244 = por %p242, %p243
      %s246 = sadd.s32 %s245, 1
      %p249 = scmp.eq.s32.totalorder %s23, 3
      %p250 = scmp.ne.s32.totalorder %s245, %s247
      %p251 = scmp.eq.s32.totalorder %s23, 0
      %p252 = por %p250, %p251
      %p253 = scmp.ne.s32.totalorder %s245, %s247
      %p254 = scmp.eq.s32.totalorder %s28, 3
      %p255 = por %p253, %p254
      %p256 = scmp.ne.s32.totalorder %s247, %s248
      %p257 = scmp.eq.s32.totalorder %s28, 0
      %p258 = por %p256, %p257
      %p259 = scmp.ne.s32.totalorder %s247, %s248
      %p260 = scmp.eq.s32.totalorder %s29, 3
      %p261 = por %p259, %p260
      %p263 = scmp.ne.s32.totalorder %s248, %s262
      %p264 = scmp.eq.s32.totalorder %s29, 0
      %p265 = por %p263, %p264
      %s267 = sadd.s32 %s266, 1
      %p270 = scmp.eq.s32.totalorder %s23, 3
      %p271 = scmp.ne.s32.totalorder %s266, %s268
      %p272 = scmp.eq.s32.totalorder %s23, 0
      %p273 = por %p271, %p272
      %p274 = scmp.ne.s32.totalorder %s266, %s268
      %p275 = scmp.eq.s32.totalorder %s28, 3
      %p276 = por %p274, %p275
      %p277 = scmp.ne.s32.totalorder %s268, %s269
      %p278 = scmp.eq.s32.totalorder %s28, 0
      %p279 = por %p277, %p278
      %p280 = scmp.ne.s32.totalorder %s268, %s269
      %p281 = scmp.eq.s32.totalorder %s29, 3
      %p282 = por %p280, %p281
      %p284 = scmp.ne.s32.totalorder %s269, %s283
      %p285 = scmp.eq.s32.totalorder %s29, 0
      %p286 = por %p284, %p285
      %s288 = sadd.s32 %s287, 1
      %p291 = scmp.eq.s32.totalorder %s23, 3
      %p292 = scmp.ne.s32.totalorder %s287, %s289
      %p293 = scmp.eq.s32.totalorder %s23, 0
      %p294 = por %p292, %p293
      %p295 = scmp.ne.s32.totalorder %s287, %s289
      %p296 = scmp.eq.s32.totalorder %s28, 3
      %p297 = por %p295, %p296
      %p298 = scmp.ne.s32.totalorder %s289, %s290
      %p299 = scmp.eq.s32.totalorder %s28, 0
      %p300 = por %p298, %p299
      %p301 = scmp.ne.s32.totalorder %s289, %s290
      %p302 = scmp.eq.s32.totalorder %s29, 3
      %p303 = por %p301, %p302
      %p305 = scmp.ne.s32.totalorder %s290, %s304
      %p306 = scmp.eq.s32.totalorder %s29, 0
      %p307 = por %p305, %p306
      %s309 = sadd.s32 %s308, 1
      %p312 = scmp.eq.s32.totalorder %s23, 3
      %p313 = scmp.ne.s32.totalorder %s308, %s310
      %p314 = scmp.eq.s32.totalorder %s23, 0
      %p315 = por %p313, %p314
      %p316 = scmp.ne.s32.totalorder %s308, %s310
      %p317 = scmp.eq.s32.totalorder %s28, 3
      %p318 = por %p316, %p317
      %p319 = scmp.ne.s32.totalorder %s310, %s311
      %p320 = scmp.eq.s32.totalorder %s28, 0
      %p321 = por %p319, %p320
      %p322 = scmp.ne.s32.totalorder %s310, %s311
      %p323 = scmp.eq.s32.totalorder %s29, 3
      %p324 = por %p322, %p323
      %p326 = scmp.ne.s32.totalorder %s311, %s325
      %p327 = scmp.eq.s32.totalorder %s29, 0
      %p328 = por %p326, %p327
      %s329 = ssub.s32 %s23, %s30
      %p330 = scmp.eq.s32.totalorder %s329, 0
      %s332 = sadd.s32 %s331, 1
      %s333 = scalar_select %p330, %s331, %s332
      %p336 = pneg %p330
      %p337 = scmp.eq.s32.totalorder %s23, 3
      %p338 = por %p336, %p337
      %p339 = scmp.ne.s32.totalorder %s331, %s334
      %p340 = scmp.eq.s32.totalorder %s23, 0
      %p341 = por %p339, %p340
      %p342 = scmp.ne.s32.totalorder %s331, %s334
      %p343 = scmp.eq.s32.totalorder %s28, 3
      %p344 = por %p342, %p343
      %p345 = scmp.ne.s32.totalorder %s334, %s335
      %p346 = scmp.eq.s32.totalorder %s28, 0
      %p347 = por %p345, %p346
      %p348 = scmp.ne.s32.totalorder %s334, %s335
      %p349 = scmp.eq.s32.totalorder %s29, 3
      %p350 = por %p348, %p349
      %p352 = scmp.ne.s32.totalorder %s335, %s351
      %p353 = scmp.eq.s32.totalorder %s29, 0
      %p354 = por %p352, %p353
      %p355 = scmp.le.s32.totalorder 1, %s23
      %p356 = scmp.lt.s32.totalorder %s23, 5
      %p357 = pnand %p355, %p356
      %p358 = pneg %p357
      // Predicated region
      $region9: #{tpu_custom_call.1} parent=5 // pred_check
        _
      $region10: #{tpu_custom_call.1} parent=5 // pred_check_branch
        %360 = sbr.rel (%p357) target = $region12
      $region11: #{tpu_custom_call.1} parent=5 // pred_region
        %s361 = ssub.s32 %s23, 1
        // Predicated region
        $region13: #{tpu_custom_call.1} parent=11 // pred_check
          %p362 = pneg %p174
        $region14: #{tpu_custom_call.1} parent=11 // pred_check_branch
          %364 = sbr.rel (%p362) target = $region16
        $region15: #{tpu_custom_call.1} parent=11 // pred_region
          _
        $region16: #{tpu_custom_call.1} parent=11 // pred_fallthru
          _
        // Predicated region
        $region17: #{tpu_custom_call.1} parent=11 // pred_check
          %p365 = pneg %p195
        $region18: #{tpu_custom_call.1} parent=11 // pred_check_branch
          %367 = sbr.rel (%p365) target = $region20
        $region19: #{tpu_custom_call.1} parent=11 // pred_region
          %s369 = ssub.s32 16, 16
          %370 = vsyncadd [#allocation5], %s369
          %s372 = sshll.u32 [#allocation4], 4
          %s373 = int_to_ptr.vmem [resolvable:$true] %s372
          %375 = dma.hbm_to_vmem [thread:$0]  %s6, 16, %s373, [#allocation5]
        $region20: #{tpu_custom_call.1} parent=11 // pred_fallthru
          _
        // Predicated region
        $region21: #{tpu_custom_call.1} parent=11 // pred_check
          %p376 = pneg %p216
        $region22: #{tpu_custom_call.1} parent=11 // pred_check_branch
          %378 = sbr.rel (%p376) target = $region24
        $region23: #{tpu_custom_call.1} parent=11 // pred_region
          %s380 = ssub.s32 3072, 3072
          %381 = vsyncadd [#allocation5], %s380
          %s382 = sshll.u32 [#allocation6], 4
          %s383 = int_to_ptr.vmem [resolvable:$true] %s382
          %388 = dma.hbm_to_vmem [thread:$0]  %s7, 3072, %s383, [#allocation5], 128, 128, 8
        $region24: #{tpu_custom_call.1} parent=11 // pred_fallthru
          _
        // Predicated region
        $region25: #{tpu_custom_call.1} parent=11 // pred_check
          %p389 = pneg %p237
        $region26: #{tpu_custom_call.1} parent=11 // pred_check_branch
          %391 = sbr.rel (%p389) target = $region28
        $region27: #{tpu_custom_call.1} parent=11 // pred_region
          _
        $region28: #{tpu_custom_call.1} parent=11 // pred_fallthru
          _
        // Predicated region
        $region29: #{tpu_custom_call.1} parent=11 // pred_check
          %p392 = pneg %p258
        $region30: #{tpu_custom_call.1} parent=11 // pred_check_branch
          %394 = sbr.rel (%p392) target = $region32
        $region31: #{tpu_custom_call.1} parent=11 // pred_region
          _
        $region32: #{tpu_custom_call.1} parent=11 // pred_fallthru
          _
        // Predicated region
        $region33: #{tpu_custom_call.1} parent=11 // pred_check
          %p395 = pneg %p279
        $region34: #{tpu_custom_call.1} parent=11 // pred_check_branch
          %397 = sbr.rel (%p395) target = $region36
        $region35: #{tpu_custom_call.1} parent=11 // pred_region
          _
        $region36: #{tpu_custom_call.1} parent=11 // pred_fallthru
          _
        // Predicated region
        $region37: #{tpu_custom_call.1} parent=11 // pred_check
          %p398 = pneg %p300
        $region38: #{tpu_custom_call.1} parent=11 // pred_check_branch
          %400 = sbr.rel (%p398) target = $region40
        $region39: #{tpu_custom_call.1} parent=11 // pred_region
          _
        $region40: #{tpu_custom_call.1} parent=11 // pred_fallthru
          _
        // Predicated region
        $region41: #{tpu_custom_call.1} parent=11 // pred_check
          %p401 = pneg %p321
        $region42: #{tpu_custom_call.1} parent=11 // pred_check_branch
          %403 = sbr.rel (%p401) target = $region44
        $region43: #{tpu_custom_call.1} parent=11 // pred_region
          _
        $region44: #{tpu_custom_call.1} parent=11 // pred_fallthru
          _
      $region12: #{tpu_custom_call.1} parent=5 // pred_fallthru
        _
      %p404 = scmp.lt.s32.totalorder %s23, 4
      // Predicated region
      $region45: #{tpu_custom_call.1} parent=5 // pred_check
        %p405 = pneg %p404
      $region46: #{tpu_custom_call.1} parent=5 // pred_check_branch
        %407 = sbr.rel (%p405) target = $region48
      $region47: #{tpu_custom_call.1} parent=5 // pred_region
        // Predicated region
        $region49: #{tpu_custom_call.1} parent=47 // pred_check
          %p408 = pneg %p43
        $region50: #{tpu_custom_call.1} parent=47 // pred_check_branch
          %410 = sbr.rel (%p408) target = $region52
        $region51: #{tpu_custom_call.1} parent=47 // pred_region
          %p411 = scmp.lt.s32.totalorder %s23, 3
          %s412 = scalar_select %p411, %s23, 3
          %s413 = smul.addr %s412, 4
          %s414 = scalar_lea.vmem %s0, %s413
        $region52: #{tpu_custom_call.1} parent=47 // pred_fallthru
          _
        // Predicated region
        $region53: #{tpu_custom_call.1} parent=47 // pred_check
          %p415 = pneg %p69
        $region54: #{tpu_custom_call.1} parent=47 // pred_check_branch
          %417 = sbr.rel (%p415) target = $region56
        $region55: #{tpu_custom_call.1} parent=47 // pred_region
          %p418 = scmp.lt.s32.totalorder %s23, 3
          %s419 = scalar_select %p418, %s23, 3
          %s420 = smul.addr %s419, 8
          %s421 = scalar_lea.vmem %s1, %s420
        $region56: #{tpu_custom_call.1} parent=47 // pred_fallthru
          _
        // Predicated region
        $region57: #{tpu_custom_call.1} parent=47 // pred_check
          %p422 = pneg %p95
        $region58: #{tpu_custom_call.1} parent=47 // pred_check_branch
          %424 = sbr.rel (%p422) target = $region60
        $region59: #{tpu_custom_call.1} parent=47 // pred_region
          %p425 = scmp.lt.s32.totalorder %s23, 3
          %s426 = scalar_select %p425, %s23, 3
          %s427 = smul.addr %s426, 4
          %s428 = scalar_lea.vmem %s2, %s427
        $region60: #{tpu_custom_call.1} parent=47 // pred_fallthru
          _
        // Predicated region
        $region61: #{tpu_custom_call.1} parent=47 // pred_check
          %p429 = pneg %p121
        $region62: #{tpu_custom_call.1} parent=47 // pred_check_branch
          %431 = sbr.rel (%p429) target = $region64
        $region63: #{tpu_custom_call.1} parent=47 // pred_region
          %p432 = scmp.lt.s32.totalorder %s23, 3
          %s433 = scalar_select %p432, %s23, 3
          %s434 = smul.addr %s433, 8
          %s435 = scalar_lea.vmem %s3, %s434
        $region64: #{tpu_custom_call.1} parent=47 // pred_fallthru
          _
        // Predicated region
        $region65: #{tpu_custom_call.1} parent=47 // pred_check
          %p436 = pneg %p147
        $region66: #{tpu_custom_call.1} parent=47 // pred_check_branch
          %438 = sbr.rel (%p436) target = $region68
        $region67: #{tpu_custom_call.1} parent=47 // pred_region
          %s439 = sand.u32 %s137, 1
          %s440 = scalar_lea.sflag [#allocation3], %s439
          %s441 = sand.u32 %s137, 1
          %s442 = scalar_lea.vmem [#allocation2], %s441
          %s444 = ssub.s32 16, 16
          %445 = vsyncadd %s440, %s444
          %s446 = smul.addr %s23, 16
          %s447 = scalar_lea.hbm %s4, %s446
          %s449 = sshll.u32 %s442, 4
          %s450 = int_to_ptr.vmem [resolvable:$true] %s449
          %452 = dma.hbm_to_vmem [thread:$0]  %s447, 16, %s450, %s440
        $region68: #{tpu_custom_call.1} parent=47 // pred_fallthru
          _
      $region48: #{tpu_custom_call.1} parent=5 // pred_fallthru
        _
      %p453 = scmp.le.s32.totalorder 1, %s23
      %p454 = scmp.lt.s32.totalorder %s23, 5
      %p455 = pnand %p453, %p454
      %p456 = pneg %p455
      // Predicated region
      $region69: #{tpu_custom_call.1} parent=5 // pred_check
        _
      $region70: #{tpu_custom_call.1} parent=5 // pred_check_branch
        %458 = sbr.rel (%p455) target = $region72
      $region71: #{tpu_custom_call.1} parent=5 // pred_region
        %s459 = ssub.s32 %s23, 1
        %s460 = sand.u32 %s140, 1
        %s461 = scalar_lea.sflag [#allocation3], %s460
        %s462 = sand.u32 %s140, 1
        %s463 = scalar_lea.vmem [#allocation2], %s462
        // Predicated region
        $region73: #{tpu_custom_call.1} parent=71 // pred_check
          %p464 = pneg %p153
        $region74: #{tpu_custom_call.1} parent=71 // pred_check_branch
          %466 = sbr.rel (%p464) target = $region76
        $region75: #{tpu_custom_call.1} parent=71 // pred_region
          %467 = dma.done %s461, 16
        $region76: #{tpu_custom_call.1} parent=71 // pred_fallthru
          _
        // Predicated region
        $region77: #{tpu_custom_call.1} parent=71 // pred_check
          %p468 = pneg %p195
        $region78: #{tpu_custom_call.1} parent=71 // pred_check_branch
          %470 = sbr.rel (%p468) target = $region80
        $region79: #{tpu_custom_call.1} parent=71 // pred_region
          %471 = dma.done [#allocation5], 16
        $region80: #{tpu_custom_call.1} parent=71 // pred_fallthru
          _
        // Predicated region
        $region81: #{tpu_custom_call.1} parent=71 // pred_check
          %p472 = pneg %p216
        $region82: #{tpu_custom_call.1} parent=71 // pred_check_branch
          %474 = sbr.rel (%p472) target = $region84
        $region83: #{tpu_custom_call.1} parent=71 // pred_region
          %475 = dma.done [#allocation5], 3072
        $region84: #{tpu_custom_call.1} parent=71 // pred_fallthru
          _
        %p476 = scmp.lt.s32.totalorder %s28, 3
        %s477 = scalar_select %p476, %s28, 3
        %s478 = smul.addr %s477, 4
        %s479 = scalar_lea.vmem %s0, %s478
        %p480 = pneg %p49
        %p481 = pneg %p46
        %p482 = scmp.lt.s32.totalorder %s28, 3
        %s483 = scalar_select %p482, %s28, 3
        %s484 = smul.addr %s483, 8
        %s485 = scalar_lea.vmem %s1, %s484
        %p486 = pneg %p75
        %p487 = pneg %p72
        %p488 = scmp.lt.s32.totalorder %s28, 3
        %s489 = scalar_select %p488, %s28, 3
        %s490 = smul.addr %s489, 4
        %s491 = scalar_lea.vmem %s2, %s490
        %p492 = pneg %p101
        %p493 = pneg %p98
        %p494 = scmp.lt.s32.totalorder %s28, 3
        %s495 = scalar_select %p494, %s28, 3
        %s496 = smul.addr %s495, 8
        %s497 = scalar_lea.vmem %s3, %s496
        %p498 = pneg %p127
        %p499 = pneg %p124
        %s500 = sand.u32 %s140, 1
        %s501 = scalar_lea.sflag [#allocation3], %s500
        %s502 = sand.u32 %s140, 1
        %s503 = scalar_lea.vmem [#allocation2], %s502
        %p504 = pneg %p153
        %p505 = pneg %p150
        %p506 = pneg %p174
        %p507 = pneg %p171
        %p508 = pneg %p195
        %p509 = pneg %p192
        %p510 = pneg %p216
        %p511 = pneg %p213
        %p512 = pneg %p237
        %p513 = pneg %p234
        %p514 = pneg %p258
        %p515 = pneg %p255
        %p516 = pneg %p279
        %p517 = pneg %p276
        %p518 = pneg %p300
        %p519 = pneg %p297
        %p520 = pneg %p321
        %p521 = pneg %p318
        %p522 = pneg %p347
        %p523 = pneg %p344
        %p524 = scmp.lt.s32.totalorder %s28, 3
        %s525 = scalar_select %p524, %s28, 3
        %s526 = scalar_lea.vmem %s13, %s525
        %p527 = scmp.lt.s32.totalorder %s28, 3
        %s528 = scalar_select %p527, %s28, 3
        %s529 = smul.addr %s528, 4
        %s530 = scalar_lea.vmem %s0, %s529
        %p531 = scmp.lt.s32.totalorder %s28, 3
        %s532 = scalar_select %p531, %s28, 3
        %s533 = smul.addr %s532, 8
        %s534 = scalar_lea.vmem %s1, %s533
        %p535 = scmp.lt.s32.totalorder %s28, 3
        %s536 = scalar_select %p535, %s28, 3
        %s537 = smul.addr %s536, 4
        %s538 = scalar_lea.vmem %s2, %s537
        %p539 = scmp.lt.s32.totalorder %s28, 3
        %s540 = scalar_select %p539, %s28, 3
        %s541 = smul.addr %s540, 8
        %s542 = scalar_lea.vmem %s3, %s541
        %p543 = scmp.lt.s32.totalorder %s28, 3
        %s544 = scalar_select %p543, %s28, 3
        %s545 = scalar_lea.vmem %s13, %s544
        %v547 = vld [vmem:[%s530] sm:$0xf]
        %v548 = vld [vmem:[%s5] sm:$0xf]
        %v549 = vld [vmem:[#allocation4] sm:$0x1]
        %v551 = vlaneseq
        %v552 = vshrl.u32 %v551, 7
        %v553 = vsub.s32 0, %v552
        %v554 = vrot.slane %v549, %v553
        %vm556 = vcmask 64512
        %v558 = vsel %vm556, %v547, 0
        %vm560 = vcmask 1043456
        %v562 = vsel %vm560, %v548, 0
        %564 = vmatprep.subr.bf16.mxu0 0
        %565 = vmatpush1.bf16.msra.mxu0 0
        %566 = vmatprep.subr.bf16.mxu0 0
        %567 = vmatpush1.bf16.msra.mxu0 0
        %568 = vmatprep.subr.bf16.mxu0 0
        %569 = vmatpush1.bf16.msra.mxu0 0
        %570 = vmatprep.subr.bf16.mxu0 0
        %571 = vmatpush1.bf16.msra.mxu0 0
        %572 = vmatprep.subr.bf16.mxu0 0
        %573 = vmatpush1.bf16.msra.mxu0 0
        %574 = vmatprep.subr.bf16.mxu0 0
        %575 = vmatpush1.bf16.msra.mxu0 0
        %576 = vmatprep.subr.bf16.mxu0 0
        %577 = vmatpush1.bf16.msra.mxu0 0
        %578 = vmatprep.subr.bf16.mxu0 0
        %579 = vmatpush1.bf16.msra.mxu0 %v562
        %580 = vmatprep.subr.bf16.mxu0 0
        %581 = vmatpush2.bf16.msra.mxu0 0
        %582 = vmatprep.subr.bf16.mxu0 0
        %583 = vmatpush2.bf16.msra.mxu0 0
        %584 = vmatprep.subr.bf16.mxu0 0
        %585 = vmatpush2.bf16.msra.mxu0 0
        %586 = vmatprep.subr.bf16.mxu0 0
        %587 = vmatpush2.bf16.msra.mxu0 0
        %588 = vmatprep.subr.bf16.mxu0 0
        %589 = vmatpush2.bf16.msra.mxu0 0
        %590 = vmatprep.subr.bf16.mxu0 0
        %591 = vmatpush2.bf16.msra.mxu0 0
        %592 = vmatprep.subr.bf16.mxu0 0
        %593 = vmatpush2.bf16.msra.mxu0 0
        %594 = vmatprep.subr.bf16.mxu0 0
        %595 = vmatpush2.bf16.msra.mxu0 0
        %596 = vmatprep.mubr.bf16.mxu0 0
        %597 = vmatmul.mubr.bf16.gmra.mxu0 %v558
        %v598 = vpop.f32.mrf.mxu0
        %v599 = vadd.f32 %v554, %v598
        %v600 = vpop.f32.mrf.mxu0
        %v601 = vpop.f32.mrf.mxu0
        %v602 = vpop.f32.mrf.mxu0
        %603 = vdwg.mxu0
        %v604 = vld [vmem:[%s534] sm:$0xff]
        %v605 = vmul.f32 %v599, %v604
        %v606 = vmul.f32 %v605, 1.6666666
        %v607 = vld [vmem:[%s538] sm:$0xf]
        %v608 = vld [vmem:[%s542] sm:$0xff]
        %v609 = vpack.c.bf16 %v606, %v606
        %v610 = vld [vmem:[#allocation6] sm:$0xff]
        %v611 = vld [vmem:[#allocation6 + $0x8] sm:$0xff]
        %v612 = vld [vmem:[#allocation6 + $0x10] sm:$0xff]
        %v613 = vld [vmem:[#allocation6 + $0x18] sm:$0xff]
        %v614 = vld [vmem:[#allocation6 + $0x20] sm:$0xff]
        %v615 = vld [vmem:[#allocation6 + $0x28] sm:$0xff]
        %v616 = vld [vmem:[#allocation6 + $0x30] sm:$0xff]
        %v617 = vld [vmem:[#allocation6 + $0x38] sm:$0xff]
        %v618 = vld [vmem:[%s8] sm:$0x3]
        %v620 = vlaneseq
        %v621 = vshrl.u32 %v620, 7
        %v622 = vsub.s32 0, %v621
        %v623 = vrot.slane %v618, %v622
        %v624 = vlaneseq
        %v625 = vshrl.u32 %v624, 7
        %v626 = vsub.s32 1, %v625
        %v627 = vrot.slane %v618, %v626
        %v638 = vunpack.c.l.b16 %v610
        %v639 = vunpack.c.h.b16 %v610
        %v640 = vunpack.c.l.b16 %v611
        %v641 = vunpack.c.h.b16 %v611
        %v642 = vunpack.c.l.b16 %v612
        %v643 = vunpack.c.h.b16 %v612
        %v644 = vunpack.c.l.b16 %v613
        %v645 = vunpack.c.h.b16 %v613
        %v646 = vunpack.c.l.b16 %v614
        %v647 = vunpack.c.h.b16 %v614
        %v648 = vunpack.c.l.b16 %v615
        %v649 = vunpack.c.h.b16 %v615
        %v650 = vunpack.c.l.b16 %v616
        %v651 = vunpack.c.h.b16 %v616
        %v652 = vunpack.c.l.b16 %v617
        %v653 = vunpack.c.h.b16 %v617
        %v654 = vpack.c.b16 %v640, %v638
        %v655 = vpack.c.b16 %v641, %v639
        %v656 = vpack.c.b16 %v644, %v642
        %v657 = vpack.c.b16 %v645, %v643
        %v658 = vpack.c.b16 %v648, %v646
        %v659 = vpack.c.b16 %v649, %v647
        %v660 = vpack.c.b16 %v652, %v650
        %v661 = vpack.c.b16 %v653, %v651
        %vm670 = vcmask 523264
        %v672 = vsel %vm670, %v609, 0
        %674 = vmatprep.subr.bf16.mxu0 0
        %675 = vmatpush1.bf16.msra.mxu0 0
        %676 = vmatprep.subr.bf16.mxu0 0
        %677 = vmatpush1.bf16.msra.mxu0 0
        %678 = vmatprep.subr.bf16.mxu0 0
        %679 = vmatpush1.bf16.msra.mxu0 0
        %680 = vmatprep.subr.bf16.mxu0 0
        %681 = vmatpush1.bf16.msra.mxu0 0
        %682 = vmatprep.subr.bf16.mxu0 %v661
        %683 = vmatpush1.bf16.msra.mxu0 %v660
        %684 = vmatprep.subr.bf16.mxu0 %v659
        %685 = vmatpush1.bf16.msra.mxu0 %v658
        %686 = vmatprep.subr.bf16.mxu0 %v657
        %687 = vmatpush1.bf16.msra.mxu0 %v656
        %688 = vmatprep.subr.bf16.mxu0 %v655
        %689 = vmatpush1.bf16.msra.mxu0 %v654
        %690 = vmatprep.subr.bf16.mxu0 0
        %691 = vmatpush2.bf16.msra.mxu0 0
        %692 = vmatprep.subr.bf16.mxu0 0
        %693 = vmatpush2.bf16.msra.mxu0 0
        %694 = vmatprep.subr.bf16.mxu0 0
        %695 = vmatpush2.bf16.msra.mxu0 0
        %696 = vmatprep.subr.bf16.mxu0 0
        %697 = vmatpush2.bf16.msra.mxu0 0
        %698 = vmatprep.subr.bf16.mxu0 0
        %699 = vmatpush2.bf16.msra.mxu0 0
        %700 = vmatprep.subr.bf16.mxu0 0
        %701 = vmatpush2.bf16.msra.mxu0 0
        %702 = vmatprep.subr.bf16.mxu0 0
        %703 = vmatpush2.bf16.msra.mxu0 0
        %704 = vmatprep.subr.bf16.mxu0 0
        %705 = vmatpush2.bf16.msra.mxu0 0
        %706 = vmatprep.mubr.bf16.mxu0 0
        %707 = vmatmul.mubr.bf16.gmra.mxu0 %v672
        %v708 = vpop.f32.mrf.mxu0
        %v709 = vadd.f32 %v623, %v708
        %v710 = vpop.f32.mrf.mxu0
        %v711 = vadd.f32 %v627, %v710
        %v712 = vpop.f32.mrf.mxu0
        %v713 = vpop.f32.mrf.mxu0
        %714 = vdwg.mxu0
        %v715 = vpack.c.bf16 %v709, %v709
        %v717 = vsel %vm556, %v607, 0
        %v720 = vsel %vm560, %v715, 0
        %722 = vmatprep.subr.bf16.mxu0 0
        %723 = vmatpush1.bf16.msra.mxu0 0
        %724 = vmatprep.subr.bf16.mxu0 0
        %725 = vmatpush1.bf16.msra.mxu0 0
        %726 = vmatprep.subr.bf16.mxu0 0
        %727 = vmatpush1.bf16.msra.mxu0 0
        %728 = vmatprep.subr.bf16.mxu0 0
        %729 = vmatpush1.bf16.msra.mxu0 0
        %730 = vmatprep.subr.bf16.mxu0 0
        %731 = vmatpush1.bf16.msra.mxu0 0
        %732 = vmatprep.subr.bf16.mxu0 0
        %733 = vmatpush1.bf16.msra.mxu0 0
        %734 = vmatprep.subr.bf16.mxu0 0
        %735 = vmatpush1.bf16.msra.mxu0 0
        %736 = vmatprep.subr.bf16.mxu0 0
        %737 = vmatpush1.bf16.msra.mxu0 %v720
        %738 = vmatprep.subr.bf16.mxu0 0
        %739 = vmatpush2.bf16.msra.mxu0 0
        %740 = vmatprep.subr.bf16.mxu0 0
        %741 = vmatpush2.bf16.msra.mxu0 0
        %742 = vmatprep.subr.bf16.mxu0 0
        %743 = vmatpush2.bf16.msra.mxu0 0
        %744 = vmatprep.subr.bf16.mxu0 0
        %745 = vmatpush2.bf16.msra.mxu0 0
        %746 = vmatprep.subr.bf16.mxu0 0
        %747 = vmatpush2.bf16.msra.mxu0 0
        %748 = vmatprep.subr.bf16.mxu0 0
        %749 = vmatpush2.bf16.msra.mxu0 0
        %750 = vmatprep.subr.bf16.mxu0 0
        %751 = vmatpush2.bf16.msra.mxu0 0
        %752 = vmatprep.subr.bf16.mxu0 0
        %753 = vmatpush2.bf16.msra.mxu0 0
        %754 = vmatprep.mubr.bf16.mxu0 0
        %755 = vmatmul.mubr.bf16.gmra.mxu0 %v717
        %v756 = vpop.f32.mrf.mxu0
        %v757 = vadd.f32 0.0, %v756
        %v758 = vpop.f32.mrf.mxu0
        %v759 = vpop.f32.mrf.mxu0
        %v760 = vpop.f32.mrf.mxu0
        %761 = vdwg.mxu0
        %763 = vset.pattern.permute.xlu0 0
        %764 = vperm.xlu0 %763, %v608
        %v765 = vpop.permute.xlu0 %764
        %v767 = vmul.f32 %v765, %v709
        %769 = vrot.lane.b32.xlu0 %v767, 64
        %v770 = vpop.permute.xlu0 %769
        %v772 = vsub.f32 %v757, %v770
        %v773 = vadd.f32 %v772, %v711
        %v774 = vmax.f32 %v773, 0.0
        %v775 = vpack.c.bf16 %v774, %v774
        %s776 = scalar_lea.vmem [#allocation6], 64
        %v777 = vld [vmem:[%s776] sm:$0xff]
        %v778 = vld [vmem:[%s776 + $0x8] sm:$0xff]
        %v779 = vld [vmem:[%s776 + $0x10] sm:$0xff]
        %v780 = vld [vmem:[%s776 + $0x18] sm:$0xff]
        %v781 = vld [vmem:[%s776 + $0x20] sm:$0xff]
        %v782 = vld [vmem:[%s776 + $0x28] sm:$0xff]
        %v783 = vld [vmem:[%s776 + $0x30] sm:$0xff]
        %v784 = vld [vmem:[%s776 + $0x38] sm:$0xff]
        %s785 = scalar_lea.vmem %s8, 2
        %v786 = vld [vmem:[%s785] sm:$0x3]
        %v788 = vlaneseq
        %v789 = vshrl.u32 %v788, 7
        %v790 = vsub.s32 0, %v789
        %v791 = vrot.slane %v786, %v790
        %v792 = vlaneseq
        %v793 = vshrl.u32 %v792, 7
        %v794 = vsub.s32 1, %v793
        %v795 = vrot.slane %v786, %v794
        %v806 = vunpack.c.l.b16 %v777
        %v807 = vunpack.c.h.b16 %v777
        %v808 = vunpack.c.l.b16 %v778
        %v809 = vunpack.c.h.b16 %v778
        %v810 = vunpack.c.l.b16 %v779
        %v811 = vunpack.c.h.b16 %v779
        %v812 = vunpack.c.l.b16 %v780
        %v813 = vunpack.c.h.b16 %v780
        %v814 = vunpack.c.l.b16 %v781
        %v815 = vunpack.c.h.b16 %v781
        %v816 = vunpack.c.l.b16 %v782
        %v817 = vunpack.c.h.b16 %v782
        %v818 = vunpack.c.l.b16 %v783
        %v819 = vunpack.c.h.b16 %v783
        %v820 = vunpack.c.l.b16 %v784
        %v821 = vunpack.c.h.b16 %v784
        %v822 = vpack.c.b16 %v808, %v806
        %v823 = vpack.c.b16 %v809, %v807
        %v824 = vpack.c.b16 %v812, %v810
        %v825 = vpack.c.b16 %v813, %v811
        %v826 = vpack.c.b16 %v816, %v814
        %v827 = vpack.c.b16 %v817, %v815
        %v828 = vpack.c.b16 %v820, %v818
        %v829 = vpack.c.b16 %v821, %v819
        %v839 = vsel %vm670, %v775, 0
        %841 = vmatprep.subr.bf16.mxu0 0
        %842 = vmatpush1.bf16.msra.mxu0 0
        %843 = vmatprep.subr.bf16.mxu0 0
        %844 = vmatpush1.bf16.msra.mxu0 0
        %845 = vmatprep.subr.bf16.mxu0 0
        %846 = vmatpush1.bf16.msra.mxu0 0
        %847 = vmatprep.subr.bf16.mxu0 0
        %848 = vmatpush1.bf16.msra.mxu0 0
        %849 = vmatprep.subr.bf16.mxu0 %v829
        %850 = vmatpush1.bf16.msra.mxu0 %v828
        %851 = vmatprep.subr.bf16.mxu0 %v827
        %852 = vmatpush1.bf16.msra.mxu0 %v826
        %853 = vmatprep.subr.bf16.mxu0 %v825
        %854 = vmatpush1.bf16.msra.mxu0 %v824
        %855 = vmatprep.subr.bf16.mxu0 %v823
        %856 = vmatpush1.bf16.msra.mxu0 %v822
        %857 = vmatprep.subr.bf16.mxu0 0
        %858 = vmatpush2.bf16.msra.mxu0 0
        %859 = vmatprep.subr.bf16.mxu0 0
        %860 = vmatpush2.bf16.msra.mxu0 0
        %861 = vmatprep.subr.bf16.mxu0 0
        %862 = vmatpush2.bf16.msra.mxu0 0
        %863 = vmatprep.subr.bf16.mxu0 0
        %864 = vmatpush2.bf16.msra.mxu0 0
        %865 = vmatprep.subr.bf16.mxu0 0
        %866 = vmatpush2.bf16.msra.mxu0 0
        %867 = vmatprep.subr.bf16.mxu0 0
        %868 = vmatpush2.bf16.msra.mxu0 0
        %869 = vmatprep.subr.bf16.mxu0 0
        %870 = vmatpush2.bf16.msra.mxu0 0
        %871 = vmatprep.subr.bf16.mxu0 0
        %872 = vmatpush2.bf16.msra.mxu0 0
        %873 = vmatprep.mubr.bf16.mxu0 0
        %874 = vmatmul.mubr.bf16.gmra.mxu0 %v839
        %v875 = vpop.f32.mrf.mxu0
        %v876 = vadd.f32 %v791, %v875
        %v877 = vpop.f32.mrf.mxu0
        %v878 = vadd.f32 %v795, %v877
        %v879 = vpop.f32.mrf.mxu0
        %v880 = vpop.f32.mrf.mxu0
        %881 = vdwg.mxu0
        %v882 = vpack.c.bf16 %v876, %v876
        %v884 = vsel %vm560, %v882, 0
        %886 = vmatprep.subr.bf16.mxu0 0
        %887 = vmatpush1.bf16.msra.mxu0 0
        %888 = vmatprep.subr.bf16.mxu0 0
        %889 = vmatpush1.bf16.msra.mxu0 0
        %890 = vmatprep.subr.bf16.mxu0 0
        %891 = vmatpush1.bf16.msra.mxu0 0
        %892 = vmatprep.subr.bf16.mxu0 0
        %893 = vmatpush1.bf16.msra.mxu0 0
        %894 = vmatprep.subr.bf16.mxu0 0
        %895 = vmatpush1.bf16.msra.mxu0 0
        %896 = vmatprep.subr.bf16.mxu0 0
        %897 = vmatpush1.bf16.msra.mxu0 0
        %898 = vmatprep.subr.bf16.mxu0 0
        %899 = vmatpush1.bf16.msra.mxu0 0
        %900 = vmatprep.subr.bf16.mxu0 0
        %901 = vmatpush1.bf16.msra.mxu0 %v884
        %902 = vmatprep.subr.bf16.mxu0 0
        %903 = vmatpush2.bf16.msra.mxu0 0
        %904 = vmatprep.subr.bf16.mxu0 0
        %905 = vmatpush2.bf16.msra.mxu0 0
        %906 = vmatprep.subr.bf16.mxu0 0
        %907 = vmatpush2.bf16.msra.mxu0 0
        %908 = vmatprep.subr.bf16.mxu0 0
        %909 = vmatpush2.bf16.msra.mxu0 0
        %910 = vmatprep.subr.bf16.mxu0 0
        %911 = vmatpush2.bf16.msra.mxu0 0
        %912 = vmatprep.subr.bf16.mxu0 0
        %913 = vmatpush2.bf16.msra.mxu0 0
        %914 = vmatprep.subr.bf16.mxu0 0
        %915 = vmatpush2.bf16.msra.mxu0 0
        %916 = vmatprep.subr.bf16.mxu0 0
        %917 = vmatpush2.bf16.msra.mxu0 0
        %918 = vmatprep.mubr.bf16.mxu0 0
        %919 = vmatmul.mubr.bf16.gmra.mxu0 %v717
        %v920 = vpop.f32.mrf.mxu0
        %v921 = vadd.f32 0.0, %v920
        %v922 = vpop.f32.mrf.mxu0
        %v923 = vpop.f32.mrf.mxu0
        %v924 = vpop.f32.mrf.mxu0
        %925 = vdwg.mxu0
        %v926 = vmul.f32 %v765, %v876
        %928 = vrot.lane.b32.xlu0 %v926, 64
        %v929 = vpop.permute.xlu0 %928
        %v931 = vsub.f32 %v921, %v929
        %v932 = vadd.f32 %v931, %v878
        %v933 = vmax.f32 %v932, 0.0
        %v934 = vpack.c.bf16 %v933, %v933
        %s935 = scalar_lea.vmem [#allocation6], 128
        %v936 = vld [vmem:[%s935] sm:$0xff]
        %v937 = vld [vmem:[%s935 + $0x8] sm:$0xff]
        %v938 = vld [vmem:[%s935 + $0x10] sm:$0xff]
        %v939 = vld [vmem:[%s935 + $0x18] sm:$0xff]
        %v940 = vld [vmem:[%s935 + $0x20] sm:$0xff]
        %v941 = vld [vmem:[%s935 + $0x28] sm:$0xff]
        %v942 = vld [vmem:[%s935 + $0x30] sm:$0xff]
        %v943 = vld [vmem:[%s935 + $0x38] sm:$0xff]
        %s944 = scalar_lea.vmem %s8, 4
        %v945 = vld [vmem:[%s944] sm:$0x3]
        %v947 = vlaneseq
        %v948 = vshrl.u32 %v947, 7
        %v949 = vsub.s32 0, %v948
        %v950 = vrot.slane %v945, %v949
        %v951 = vlaneseq
        %v952 = vshrl.u32 %v951, 7
        %v953 = vsub.s32 1, %v952
        %v954 = vrot.slane %v945, %v953
        %v965 = vunpack.c.l.b16 %v936
        %v966 = vunpack.c.h.b16 %v936
        %v967 = vunpack.c.l.b16 %v937
        %v968 = vunpack.c.h.b16 %v937
        %v969 = vunpack.c.l.b16 %v938
        %v970 = vunpack.c.h.b16 %v938
        %v971 = vunpack.c.l.b16 %v939
        %v972 = vunpack.c.h.b16 %v939
        %v973 = vunpack.c.l.b16 %v940
        %v974 = vunpack.c.h.b16 %v940
        %v975 = vunpack.c.l.b16 %v941
        %v976 = vunpack.c.h.b16 %v941
        %v977 = vunpack.c.l.b16 %v942
        %v978 = vunpack.c.h.b16 %v942
        %v979 = vunpack.c.l.b16 %v943
        %v980 = vunpack.c.h.b16 %v943
        %v981 = vpack.c.b16 %v967, %v965
        %v982 = vpack.c.b16 %v968, %v966
        %v983 = vpack.c.b16 %v971, %v969
        %v984 = vpack.c.b16 %v972, %v970
        %v985 = vpack.c.b16 %v975, %v973
        %v986 = vpack.c.b16 %v976, %v974
        %v987 = vpack.c.b16 %v979, %v977
        %v988 = vpack.c.b16 %v980, %v978
        %v998 = vsel %vm670, %v934, 0
        %1000 = vmatprep.subr.bf16.mxu0 0
        %1001 = vmatpush1.bf16.msra.mxu0 0
        %1002 = vmatprep.subr.bf16.mxu0 0
        %1003 = vmatpush1.bf16.msra.mxu0 0
        %1004 = vmatprep.subr.bf16.mxu0 0
        %1005 = vmatpush1.bf16.msra.mxu0 0
        %1006 = vmatprep.subr.bf16.mxu0 0
        %1007 = vmatpush1.bf16.msra.mxu0 0
        %1008 = vmatprep.subr.bf16.mxu0 %v988
        %1009 = vmatpush1.bf16.msra.mxu0 %v987
        %1010 = vmatprep.subr.bf16.mxu0 %v986
        %1011 = vmatpush1.bf16.msra.mxu0 %v985
        %1012 = vmatprep.subr.bf16.mxu0 %v984
        %1013 = vmatpush1.bf16.msra.mxu0 %v983
        %1014 = vmatprep.subr.bf16.mxu0 %v982
        %1015 = vmatpush1.bf16.msra.mxu0 %v981
        %1016 = vmatprep.subr.bf16.mxu0 0
        %1017 = vmatpush2.bf16.msra.mxu0 0
        %1018 = vmatprep.subr.bf16.mxu0 0
        %1019 = vmatpush2.bf16.msra.mxu0 0
        %1020 = vmatprep.subr.bf16.mxu0 0
        %1021 = vmatpush2.bf16.msra.mxu0 0
        %1022 = vmatprep.subr.bf16.mxu0 0
        %1023 = vmatpush2.bf16.msra.mxu0 0
        %1024 = vmatprep.subr.bf16.mxu0 0
        %1025 = vmatpush2.bf16.msra.mxu0 0
        %1026 = vmatprep.subr.bf16.mxu0 0
        %1027 = vmatpush2.bf16.msra.mxu0 0
        %1028 = vmatprep.subr.bf16.mxu0 0
        %1029 = vmatpush2.bf16.msra.mxu0 0
        %1030 = vmatprep.subr.bf16.mxu0 0
        %1031 = vmatpush2.bf16.msra.mxu0 0
        %1032 = vmatprep.mubr.bf16.mxu0 0
        %1033 = vmatmul.mubr.bf16.gmra.mxu0 %v998
        %v1034 = vpop.f32.mrf.mxu0
        %v1035 = vadd.f32 %v950, %v1034
        %v1036 = vpop.f32.mrf.mxu0
        %v1037 = vadd.f32 %v954, %v1036
        %v1038 = vpop.f32.mrf.mxu0
        %v1039 = vpop.f32.mrf.mxu0
        %1040 = vdwg.mxu0
        %v1041 = vpack.c.bf16 %v1035, %v1035
        %v1043 = vsel %vm560, %v1041, 0
        %1045 = vmatprep.subr.bf16.mxu0 0
        %1046 = vmatpush1.bf16.msra.mxu0 0
        %1047 = vmatprep.subr.bf16.mxu0 0
        %1048 = vmatpush1.bf16.msra.mxu0 0
        %1049 = vmatprep.subr.bf16.mxu0 0
        %1050 = vmatpush1.bf16.msra.mxu0 0
        %1051 = vmatprep.subr.bf16.mxu0 0
        %1052 = vmatpush1.bf16.msra.mxu0 0
        %1053 = vmatprep.subr.bf16.mxu0 0
        %1054 = vmatpush1.bf16.msra.mxu0 0
        %1055 = vmatprep.subr.bf16.mxu0 0
        %1056 = vmatpush1.bf16.msra.mxu0 0
        %1057 = vmatprep.subr.bf16.mxu0 0
        %1058 = vmatpush1.bf16.msra.mxu0 0
        %1059 = vmatprep.subr.bf16.mxu0 0
        %1060 = vmatpush1.bf16.msra.mxu0 %v1043
        %1061 = vmatprep.subr.bf16.mxu0 0
        %1062 = vmatpush2.bf16.msra.mxu0 0
        %1063 = vmatprep.subr.bf16.mxu0 0
        %1064 = vmatpush2.bf16.msra.mxu0 0
        %1065 = vmatprep.subr.bf16.mxu0 0
        %1066 = vmatpush2.bf16.msra.mxu0 0
        %1067 = vmatprep.subr.bf16.mxu0 0
        %1068 = vmatpush2.bf16.msra.mxu0 0
        %1069 = vmatprep.subr.bf16.mxu0 0
        %1070 = vmatpush2.bf16.msra.mxu0 0
        %1071 = vmatprep.subr.bf16.mxu0 0
        %1072 = vmatpush2.bf16.msra.mxu0 0
        %1073 = vmatprep.subr.bf16.mxu0 0
        %1074 = vmatpush2.bf16.msra.mxu0 0
        %1075 = vmatprep.subr.bf16.mxu0 0
        %1076 = vmatpush2.bf16.msra.mxu0 0
        %1077 = vmatprep.mubr.bf16.mxu0 0
        %1078 = vmatmul.mubr.bf16.gmra.mxu0 %v717
        %v1079 = vpop.f32.mrf.mxu0
        %v1080 = vadd.f32 0.0, %v1079
        %v1081 = vpop.f32.mrf.mxu0
        %v1082 = vpop.f32.mrf.mxu0
        %v1083 = vpop.f32.mrf.mxu0
        %1084 = vdwg.mxu0
        %v1085 = vmul.f32 %v765, %v1035
        %1087 = vrot.lane.b32.xlu0 %v1085, 64
        %v1088 = vpop.permute.xlu0 %1087
        %v1090 = vsub.f32 %v1080, %v1088
        %v1091 = vadd.f32 %v1090, %v1037
        %v1092 = vmax.f32 %v1091, 0.0
        %v1093 = vld [vmem:[%s463] sm:$0x1]
        %v1095 = vsel %vm556, %v1093, 0
        %1097 = vmatprep.subr.mxu0 0.0
        %1098 = vmatpush1.msra.mxu0 0.0
        %1099 = vmatprep.subr.mxu0 0.0
        %1100 = vmatpush1.msra.mxu0 0.0
        %1101 = vmatprep.subr.mxu0 0.0
        %1102 = vmatpush1.msra.mxu0 0.0
        %1103 = vmatprep.subr.mxu0 0.0
        %1104 = vmatpush1.msra.mxu0 0.0
        %1105 = vmatprep.subr.mxu0 0.0
        %1106 = vmatpush1.msra.mxu0 0.0
        %1107 = vmatprep.subr.mxu0 0.0
        %1108 = vmatpush1.msra.mxu0 0.0
        %1109 = vmatprep.subr.mxu0 0.0
        %1110 = vmatpush1.msra.mxu0 0.0
        %1111 = vmatprep.subr.mxu0 0.0
        %1112 = vmatpush1.msra.mxu0 0.0
        %1113 = vmatprep.subr.mxu0 0.0
        %1114 = vmatpush1.msra.mxu0 0.0
        %1115 = vmatprep.subr.mxu0 0.0
        %1116 = vmatpush1.msra.mxu0 0.0
        %1117 = vmatprep.subr.mxu0 0.0
        %1118 = vmatpush1.msra.mxu0 0.0
        %1119 = vmatprep.subr.mxu0 0.0
        %1120 = vmatpush1.msra.mxu0 0.0
        %1121 = vmatprep.subr.mxu0 0.0
        %1122 = vmatpush1.msra.mxu0 0.0
        %1123 = vmatprep.subr.mxu0 0.0
        %1124 = vmatpush1.msra.mxu0 0.0
        %1125 = vmatprep.subr.mxu0 0.0
        %1126 = vmatpush1.msra.mxu0 0.0
        %1127 = vmatprep.subr.mxu0 0.0
        %1128 = vmatpush1.msra.mxu0 %v1092
        %1129 = vmatprep.subr.mxu0 0.0
        %1130 = vmatpush2.msra.mxu0 0.0
        %1131 = vmatprep.subr.mxu0 0.0
        %1132 = vmatpush2.msra.mxu0 0.0
        %1133 = vmatprep.subr.mxu0 0.0
        %1134 = vmatpush2.msra.mxu0 0.0
        %1135 = vmatprep.subr.mxu0 0.0
        %1136 = vmatpush2.msra.mxu0 0.0
        %1137 = vmatprep.subr.mxu0 0.0
        %1138 = vmatpush2.msra.mxu0 0.0
        %1139 = vmatprep.subr.mxu0 0.0
        %1140 = vmatpush2.msra.mxu0 0.0
        %1141 = vmatprep.subr.mxu0 0.0
        %1142 = vmatpush2.msra.mxu0 0.0
        %1143 = vmatprep.subr.mxu0 0.0
        %1144 = vmatpush2.msra.mxu0 0.0
        %1145 = vmatprep.subr.mxu0 0.0
        %1146 = vmatpush2.msra.mxu0 0.0
        %1147 = vmatprep.subr.mxu0 0.0
        %1148 = vmatpush2.msra.mxu0 0.0
        %1149 = vmatprep.subr.mxu0 0.0
        %1150 = vmatpush2.msra.mxu0 0.0
        %1151 = vmatprep.subr.mxu0 0.0
        %1152 = vmatpush2.msra.mxu0 0.0
        %1153 = vmatprep.subr.mxu0 0.0
        %1154 = vmatpush2.msra.mxu0 0.0
        %1155 = vmatprep.subr.mxu0 0.0
        %1156 = vmatpush2.msra.mxu0 0.0
        %1157 = vmatprep.subr.mxu0 0.0
        %1158 = vmatpush2.msra.mxu0 0.0
        %1159 = vmatprep.subr.mxu0 0.0
        %1160 = vmatpush2.msra.mxu0 0.0
        %1161 = vmatprep.mubr.f32.mxu0 0.0
        %1162 = vmatmul.mubr.f32.gmra.mxu0 %v1095
        %v1163 = vpop.f32.mrf.mxu0
        %v1164 = vadd.f32 0.0, %v1163
        %v1165 = vpop.f32.mrf.mxu0
        %1166 = vdwg.mxu0
        %v1167 = vpack.c.bf16 %v1164, %v1164
        %v1168 = vld [vmem:[%s9] sm:$0xf]
        %v1169 = vld [vmem:[%s9 + $0x4] sm:$0xf]
        %v1170 = vld [vmem:[%s9 + $0x8] sm:$0xf]
        %v1171 = vld [vmem:[%s9 + $0xc] sm:$0xf]
        %v1172 = vld [vmem:[%s9 + $0x10] sm:$0xf]
        %v1173 = vld [vmem:[%s9 + $0x14] sm:$0xf]
        %v1174 = vld [vmem:[%s9 + $0x18] sm:$0xf]
        %v1175 = vld [vmem:[%s9 + $0x1c] sm:$0xf]
        %v1176 = vld [vmem:[%s10] sm:$0x1]
        %v1185 = vunpack.c.l.b16 %v1168
        %v1186 = vunpack.c.l.b16 %v1169
        %v1187 = vunpack.c.l.b16 %v1170
        %v1188 = vunpack.c.l.b16 %v1171
        %v1189 = vunpack.c.l.b16 %v1172
        %v1190 = vunpack.c.l.b16 %v1173
        %v1191 = vunpack.c.l.b16 %v1174
        %v1192 = vunpack.c.l.b16 %v1175
        %v1193 = vpack.c.b16 %v1186, %v1185
        %v1194 = vpack.c.b16 %v1188, %v1187
        %v1195 = vpack.c.b16 %v1190, %v1189
        %v1196 = vpack.c.b16 %v1192, %v1191
        %v1202 = vsel %vm670, %v1167, 0
        %1204 = vmatprep.subr.bf16.mxu0 0
        %1205 = vmatpush1.bf16.msra.mxu0 0
        %1206 = vmatprep.subr.bf16.mxu0 0
        %1207 = vmatpush1.bf16.msra.mxu0 0
        %1208 = vmatprep.subr.bf16.mxu0 0
        %1209 = vmatpush1.bf16.msra.mxu0 0
        %1210 = vmatprep.subr.bf16.mxu0 0
        %1211 = vmatpush1.bf16.msra.mxu0 0
        %1212 = vmatprep.subr.bf16.mxu0 0
        %1213 = vmatpush1.bf16.msra.mxu0 %v1196
        %1214 = vmatprep.subr.bf16.mxu0 0
        %1215 = vmatpush1.bf16.msra.mxu0 %v1195
        %1216 = vmatprep.subr.bf16.mxu0 0
        %1217 = vmatpush1.bf16.msra.mxu0 %v1194
        %1218 = vmatprep.subr.bf16.mxu0 0
        %1219 = vmatpush1.bf16.msra.mxu0 %v1193
        %1220 = vmatprep.subr.bf16.mxu0 0
        %1221 = vmatpush2.bf16.msra.mxu0 0
        %1222 = vmatprep.subr.bf16.mxu0 0
        %1223 = vmatpush2.bf16.msra.mxu0 0
        %1224 = vmatprep.subr.bf16.mxu0 0
        %1225 = vmatpush2.bf16.msra.mxu0 0
        %1226 = vmatprep.subr.bf16.mxu0 0
        %1227 = vmatpush2.bf16.msra.mxu0 0
        %1228 = vmatprep.subr.bf16.mxu0 0
        %1229 = vmatpush2.bf16.msra.mxu0 0
        %1230 = vmatprep.subr.bf16.mxu0 0
        %1231 = vmatpush2.bf16.msra.mxu0 0
        %1232 = vmatprep.subr.bf16.mxu0 0
        %1233 = vmatpush2.bf16.msra.mxu0 0
        %1234 = vmatprep.subr.bf16.mxu0 0
        %1235 = vmatpush2.bf16.msra.mxu0 0
        %1236 = vmatprep.mubr.bf16.mxu0 0
        %1237 = vmatmul.mubr.bf16.gmra.mxu0 %v1202
        %v1238 = vpop.f32.mrf.mxu0
        %v1239 = vadd.f32 %v1176, %v1238
        %v1240 = vpop.f32.mrf.mxu0
        %v1241 = vpop.f32.mrf.mxu0
        %v1242 = vpop.f32.mrf.mxu0
        %1243 = vdwg.mxu0
        %v1244 = vmax.f32 %v1239, 0.0
        %v1245 = vpack.c.bf16 %v1244, %v1244
        %v1246 = vld [vmem:[%s11] sm:$0xf]
        %v1247 = vld [vmem:[%s11 + $0x4] sm:$0xf]
        %v1248 = vld [vmem:[%s11 + $0x8] sm:$0xf]
        %v1249 = vld [vmem:[%s11 + $0xc] sm:$0xf]
        %v1250 = vld [vmem:[%s11 + $0x10] sm:$0xf]
        %v1251 = vld [vmem:[%s11 + $0x14] sm:$0xf]
        %v1252 = vld [vmem:[%s11 + $0x18] sm:$0xf]
        %v1253 = vld [vmem:[%s11 + $0x1c] sm:$0xf]
        %v1254 = vld [vmem:[%s11 + $0x20] sm:$0xf]
        %v1255 = vld [vmem:[%s11 + $0x24] sm:$0xf]
        %v1256 = vld [vmem:[%s11 + $0x28] sm:$0xf]
        %v1257 = vld [vmem:[%s11 + $0x2c] sm:$0xf]
        %v1258 = vld [vmem:[%s11 + $0x30] sm:$0xf]
        %v1259 = vld [vmem:[%s11 + $0x34] sm:$0xf]
        %v1260 = vld [vmem:[%s11 + $0x38] sm:$0xf]
        %v1261 = vld [vmem:[%s11 + $0x3c] sm:$0xf]
        %v1262 = vld [vmem:[%s12] sm:$0x1]
        %v1279 = vunpack.c.l.b16 %v1246
        %v1280 = vunpack.c.l.b16 %v1247
        %v1281 = vunpack.c.l.b16 %v1248
        %v1282 = vunpack.c.l.b16 %v1249
        %v1283 = vunpack.c.l.b16 %v1250
        %v1284 = vunpack.c.l.b16 %v1251
        %v1285 = vunpack.c.l.b16 %v1252
        %v1286 = vunpack.c.l.b16 %v1253
        %v1287 = vunpack.c.l.b16 %v1254
        %v1288 = vunpack.c.l.b16 %v1255
        %v1289 = vunpack.c.l.b16 %v1256
        %v1290 = vunpack.c.l.b16 %v1257
        %v1291 = vunpack.c.l.b16 %v1258
        %v1292 = vunpack.c.l.b16 %v1259
        %v1293 = vunpack.c.l.b16 %v1260
        %v1294 = vunpack.c.l.b16 %v1261
        %v1295 = vpack.c.b16 %v1280, %v1279
        %v1296 = vpack.c.b16 %v1282, %v1281
        %v1297 = vpack.c.b16 %v1284, %v1283
        %v1298 = vpack.c.b16 %v1286, %v1285
        %v1299 = vpack.c.b16 %v1288, %v1287
        %v1300 = vpack.c.b16 %v1290, %v1289
        %v1301 = vpack.c.b16 %v1292, %v1291
        %v1302 = vpack.c.b16 %v1294, %v1293
        %1311 = vmatprep.subr.bf16.mxu0 0
        %1312 = vmatpush1.bf16.msra.mxu0 %v1302
        %1313 = vmatprep.subr.bf16.mxu0 0
        %1314 = vmatpush1.bf16.msra.mxu0 %v1301
        %1315 = vmatprep.subr.bf16.mxu0 0
        %1316 = vmatpush1.bf16.msra.mxu0 %v1300
        %1317 = vmatprep.subr.bf16.mxu0 0
        %1318 = vmatpush1.bf16.msra.mxu0 %v1299
        %1319 = vmatprep.subr.bf16.mxu0 0
        %1320 = vmatpush1.bf16.msra.mxu0 %v1298
        %1321 = vmatprep.subr.bf16.mxu0 0
        %1322 = vmatpush1.bf16.msra.mxu0 %v1297
        %1323 = vmatprep.subr.bf16.mxu0 0
        %1324 = vmatpush1.bf16.msra.mxu0 %v1296
        %1325 = vmatprep.subr.bf16.mxu0 0
        %1326 = vmatpush1.bf16.msra.mxu0 %v1295
        %1327 = vmatprep.subr.bf16.mxu0 0
        %1328 = vmatpush2.bf16.msra.mxu0 0
        %1329 = vmatprep.subr.bf16.mxu0 0
        %1330 = vmatpush2.bf16.msra.mxu0 0
        %1331 = vmatprep.subr.bf16.mxu0 0
        %1332 = vmatpush2.bf16.msra.mxu0 0
        %1333 = vmatprep.subr.bf16.mxu0 0
        %1334 = vmatpush2.bf16.msra.mxu0 0
        %1335 = vmatprep.subr.bf16.mxu0 0
        %1336 = vmatpush2.bf16.msra.mxu0 0
        %1337 = vmatprep.subr.bf16.mxu0 0
        %1338 = vmatpush2.bf16.msra.mxu0 0
        %1339 = vmatprep.subr.bf16.mxu0 0
        %1340 = vmatpush2.bf16.msra.mxu0 0
        %1341 = vmatprep.subr.bf16.mxu0 0
        %1342 = vmatpush2.bf16.msra.mxu0 0
        %1343 = vmatprep.mubr.bf16.mxu0 0
        %1344 = vmatmul.mubr.bf16.gmra.mxu0 %v1245
        %v1345 = vpop.f32.mrf.mxu0
        %v1346 = vadd.f32 %v1262, %v1345
        %v1347 = vpop.f32.mrf.mxu0
        %v1348 = vpop.f32.mrf.mxu0
        %v1349 = vpop.f32.mrf.mxu0
        %1350 = vdwg.mxu0
        %vm1351 = vcmask 16384
        %1352 = vst.msk [vmem:[%s545] sm:$0x1] %vm1351, %v1346
        %p1353 = scmp.lt.s32.totalorder %s28, 3
        %s1354 = scalar_select %p1353, %s28, 3
        %s1355 = scalar_lea.vmem %s13, %s1354
        // Predicated region
        $region85: #{tpu_custom_call.1} parent=71 // pred_check
          %p1356 = pneg %p344
        $region86: #{tpu_custom_call.1} parent=71 // pred_check_branch
          %1358 = sbr.rel (%p1356) target = $region88
        $region87: #{tpu_custom_call.1} parent=71 // pred_region
          _
        $region88: #{tpu_custom_call.1} parent=71 // pred_fallthru
          _
      $region72: #{tpu_custom_call.1} parent=5 // pred_fallthru
        _
      %p1359 = scmp.le.s32.totalorder 2, %s23
      // Predicated region
      $region89: #{tpu_custom_call.1} parent=5 // pred_check
        %p1360 = pneg %p1359
      $region90: #{tpu_custom_call.1} parent=5 // pred_check_branch
        %1362 = sbr.rel (%p1360) target = $region92
      $region91: #{tpu_custom_call.1} parent=5 // pred_region
        %s1363 = ssub.s32 %s23, 2
        // Predicated region
        $region93: #{tpu_custom_call.1} parent=91 // pred_check
          %p1364 = pneg %p350
        $region94: #{tpu_custom_call.1} parent=91 // pred_check_branch
          %1366 = sbr.rel (%p1364) target = $region96
        $region95: #{tpu_custom_call.1} parent=91 // pred_region
          %p1367 = scmp.lt.s32.totalorder %s29, 3
          %s1368 = scalar_select %p1367, %s29, 3
          %s1369 = scalar_lea.vmem %s13, %s1368
        $region96: #{tpu_custom_call.1} parent=91 // pred_fallthru
          _
      $region92: #{tpu_custom_call.1} parent=5 // pred_fallthru
        _
    $region6: #{tpu_custom_call.1} parent=1 // loop_footer
      %s27 = sadd.s32 1, %s23
    $region7: #{tpu_custom_call.1} parent=1 // loop_footer_branch
      %22 = sbr.rel target = $region3
    $region8: #{tpu_custom_call.1} parent=1 // loop_exit
      _
    %1370 = vsyncpa [#allocation3], 1
    %s1371 = scalar_lea.sflag [#allocation3], 1
    %1372 = vsyncpa %s1371, 1
    %1373 = vsyncpa [#allocation5], 1

</llo_original>
